<compile_context>
chip_gen: v7x
topology: tpu7x:2x2x1
jax: 0.10.0
libtpu: 0.0.40
codegen_flags: <defaults>
</compile_context>

<pallas_src>
import functools

import jax
import jax.numpy as jnp
from jax import lax
from jax.experimental import pallas as pl
from jax.experimental.pallas import tpu as pltpu

BN_EPS = 1e-5
TILE_MO = 2048  # output-pixel rows per grid step (input rows per step = 4 * TILE_MO)


def _round_up(v, m):
    return -(-v // m) * m


def _stats_kernel(x_ref, o_ref, *, tmo, mo, steps_per_core):
    """Per-core accumulation of per-channel sum (row 0) and sum-of-squares (row 1)."""
    c = pl.program_id(0)   # core split (parallel)
    i = pl.program_id(1)   # Mo tiles for this core (arbitrary / accumulator)

    @pl.when(i == 0)
    def _():
        o_ref[...] = jnp.zeros_like(o_ref)

    cin = x_ref.shape[2]
    # Mask rows past the true Mo (ragged tail / redundant clamped block).
    start = (c * steps_per_core + i) * tmo
    row = lax.broadcasted_iota(jnp.int32, (tmo, cin), 0)
    valid = (start + row) < mo

    x0 = x_ref[0]
    x1 = x_ref[1]
    x2 = x_ref[2]
    x3 = x_ref[3]
    s = x0 + x1 + x2 + x3
    q = x0 * x0 + x1 * x1 + x2 * x2 + x3 * x3
    s = jnp.where(valid, s, 0.0)
    q = jnp.where(valid, q, 0.0)
    o_ref[0:1, :] += jnp.sum(s, axis=0, keepdims=True)
    o_ref[1:2, :] += jnp.sum(q, axis=0, keepdims=True)


def _transition_kernel(stats_ref, gamma_ref, beta_ref, w_ref, b_ref, x_ref, o_ref,
                       *, inv_m):
    # Fold BN into a single scale/shift per channel (tiny (1, Cin) work per tile).
    mean = stats_ref[0:1, :] * inv_m
    ex2 = stats_ref[1:2, :] * inv_m
    var = jnp.maximum(ex2 - mean * mean, 0.0)      # biased variance, clamped >= 0
    scale = gamma_ref[...] * lax.rsqrt(var + BN_EPS)
    shift = beta_ref[...] - mean * scale

    tmo, cin = x_ref.shape[1], x_ref.shape[2]
    scale_b = jnp.broadcast_to(scale, (tmo, cin))  # hoist broadcasts (no CSE in JAX)
    shift_b = jnp.broadcast_to(shift, (tmo, cin))

    # BN + ReLU on each of the 4 pool-window slabs, then average -> (tmo, Cin).
    z0 = jnp.maximum(x_ref[0] * scale_b + shift_b, 0.0)
    z1 = jnp.maximum(x_ref[1] * scale_b + shift_b, 0.0)
    z2 = jnp.maximum(x_ref[2] * scale_b + shift_b, 0.0)
    z3 = jnp.maximum(x_ref[3] * scale_b + shift_b, 0.0)
    pooled = (z0 + z1 + z2 + z3) * 0.25

    # 1x1 conv as a single MXU matmul (+ bias); pool/conv commute exactly.
    o_ref[...] = (
        jnp.dot(pooled, w_ref[...], preferred_element_type=jnp.float32) + b_ref[...]
    )


def transition_block_pallas(x_nchw, gamma, beta, conv_w, conv_b, *, tile_mo=TILE_MO):
    """x_nchw: (N, Cin, H, W) float32. Returns (N, Cout, H//2, W//2) float32."""
    n, cin, h, w = x_nchw.shape
    cout = conv_w.shape[1]
    # TODO(synk): odd H/W (AvgPool drops the last row/col while BN still sees it) not handled.
    assert h % 2 == 0 and w % 2 == 0, "transition_block_pallas requires even H, W"
    ho, wo = h // 2, w // 2
    mo = n * ho * wo
    m_true = n * h * w

    cout_pad = _round_up(cout, 8)                  # narrow, lane-masked stores are cheap
    tmo = min(tile_mo, _round_up(mo, 8))
    tmo = max(8, (tmo // 8) * 8)
    grid_mo = pl.cdiv(mo, tmo)
    split = 2 if grid_mo >= 2 else 1               # split stats across v7x's 2 TCs
    steps_per_core = pl.cdiv(grid_mo, split)

    # Glue (single XLA relayout): NCHW -> (4, Mo, Cin), axis 0 = 2x2 window position.
    x_nhwc = jnp.transpose(x_nchw, (0, 2, 3, 1))                      # (N, H, W, C)
    x6 = x_nhwc.reshape(n, ho, 2, wo, 2, cin)
    x_arr = jnp.transpose(x6, (2, 4, 0, 1, 3, 5)).reshape(4, mo, cin)

    gamma_p = gamma.astype(jnp.float32).reshape(1, cin)
    beta_p = beta.astype(jnp.float32).reshape(1, cin)
    w_p = jnp.pad(conv_w.astype(jnp.float32), ((0, 0), (0, cout_pad - cout)))
    b_p = jnp.pad(conv_b.astype(jnp.float32).reshape(1, cout),
                  ((0, 0), (0, cout_pad - cout)))

    def stats_x_index(c, i):
        # Clamp so the (possibly redundant) extra step of the second core never maps
        # to a fully out-of-bounds block; its rows are masked out in-kernel anyway.
        return (0, jnp.minimum(c * steps_per_core + i, grid_mo - 1), 0)

    # Pass 1: per-channel batch statistics (sum / sum-of-squares), per-core partials.
    stats = pl.pallas_call(
        functools.partial(_stats_kernel, tmo=tmo, mo=mo, steps_per_core=steps_per_core),
        out_shape=jax.ShapeDtypeStruct((split * 8, cin), jnp.float32),
        grid_spec=pltpu.PrefetchScalarGridSpec(
            num_scalar_prefetch=0,
            grid=(split, steps_per_core),
            in_specs=[pl.BlockSpec((4, tmo, cin), stats_x_index)],
            out_specs=pl.BlockSpec((8, cin), lambda c, i: (c, 0)),
        ),
        compiler_params=pltpu.CompilerParams(
            dimension_semantics=("parallel", "arbitrary"),
        ),
    )(x_arr)
    # Combine the per-core partials (tiny (split, 8, Cin) reduce in plain XLA).
    stats = stats.reshape(split, 8, cin).sum(axis=0)   # row 0 = sum, row 1 = sumsq

    # Pass 2: normalize + ReLU + 2x2 average pool + 1x1 conv.
    out2d = pl.pallas_call(
        functools.partial(_transition_kernel, inv_m=1.0 / float(m_true)),
        out_shape=jax.ShapeDtypeStruct((mo, cout_pad), jnp.float32),
        grid_spec=pltpu.PrefetchScalarGridSpec(
            num_scalar_prefetch=0,
            grid=(grid_mo,),
            in_specs=[
                pl.BlockSpec((8, cin), lambda i: (0, 0)),             # stats
                pl.BlockSpec((1, cin), lambda i: (0, 0)),             # gamma
                pl.BlockSpec((1, cin), lambda i: (0, 0)),             # beta
                pl.BlockSpec((cin, cout_pad), lambda i: (0, 0)),      # conv weight
                pl.BlockSpec((1, cout_pad), lambda i: (0, 0)),        # conv bias
                pl.BlockSpec((4, tmo, cin), lambda i: (0, i, 0)),     # activations
            ],
            out_specs=pl.BlockSpec((tmo, cout_pad), lambda i: (i, 0)),
        ),
        compiler_params=pltpu.CompilerParams(
            dimension_semantics=("parallel",),   # independent tiles -> both v7x TCs
        ),
    )(stats, gamma_p, beta_p, w_p, b_p, x_arr)

    # Glue: (Mo, Cout_pad) -> NCHW, dropping padded output channels.
    out = out2d[:, :cout].reshape(n, ho, wo, cout)
    return jnp.transpose(out, (0, 3, 1, 2))


def transition_block_reference(x_nchw, gamma, beta, conv_w, conv_b):
    """Pure-JAX reference matching the PyTorch forward (train-mode BN)."""
    n, cin, h, w = x_nchw.shape
    cout = conv_w.shape[1]
    mean = jnp.mean(x_nchw, axis=(0, 2, 3), keepdims=True)
    var = jnp.var(x_nchw, axis=(0, 2, 3), keepdims=True)  # biased
    xn = (x_nchw - mean) / jnp.sqrt(var + BN_EPS)
    xn = xn * gamma.reshape(1, cin, 1, 1) + beta.reshape(1, cin, 1, 1)
    xr = jnp.maximum(xn, 0.0)
    y = jnp.einsum("nchw,co->nohw", xr, conv_w) + conv_b.reshape(1, cout, 1, 1)
    pooled = y.reshape(n, cout, h // 2, 2, w // 2, 2).mean(axis=(3, 5))
    return pooled


if __name__ == "__main__":
    key = jax.random.PRNGKey(0)
    kx, kg, kb, kw, kbc = jax.random.split(key, 5)

    N, INPLANES, H, W = 2, 26, 32, 32          # inplanes // 13 == 2 output channels
    COUT = INPLANES // 13

    x = jax.random.normal(kx, (N, INPLANES, H, W), dtype=jnp.float32)
    # Deterministic synthetic parameters (shapes per nn.BatchNorm2d / nn.Conv2d k=1).
    gamma = 1.0 + 0.1 * jax.random.normal(kg, (INPLANES,), dtype=jnp.float32)
    beta = 0.1 * jax.random.normal(kb, (INPLANES,), dtype=jnp.float32)
    conv_w = jax.random.normal(kw, (INPLANES, COUT), dtype=jnp.float32) / jnp.sqrt(INPLANES)
    conv_b = 0.1 * jax.random.normal(kbc, (COUT,), dtype=jnp.float32)

    out = transition_block_pallas(x, gamma, beta, conv_w, conv_b)
    out = jax.block_until_ready(out)

    ref = transition_block_reference(x, gamma, beta, conv_w, conv_b)
    assert out.shape == (N, COUT, H // 2, W // 2), out.shape
    assert jnp.allclose(out, ref, rtol=1e-4, atol=1e-4), float(jnp.max(jnp.abs(out - ref)))

    print("KERNEL_OK")
</pallas_src>

<mosaic_0001>
module attributes {stable_mosaic.version = 11 : i64} {
  func.func @_stats_kernel(%arg0: i32, %arg1: i32, %arg2: memref<4x512x26xf32, #tpu.memory_space<vmem>>, %arg3: memref<8x26xf32, #tpu.memory_space<vmem>>) attributes {dimension_semantics = [#tpu.dimension_semantics<parallel>, #tpu.dimension_semantics<arbitrary>], iteration_bounds = array<i64: 1, 1>, scalar_prefetch = 0 : i64, scratch_operands = 0 : i64, tpu.core_type = #tpu.core_type<tc>, window_params = [{transform_indices = @transform_0, window_bounds = array<i64: 4, 512, 26>}, {transform_indices = @transform_1, window_bounds = array<i64: 8, 26>}]} {
    %c0_i32 = arith.constant 0 : i32
    %0 = arith.cmpi eq, %arg1, %c0_i32 : i32
    %1 = arith.extui %0 : i1 to i32
    %c0_i32_0 = arith.constant 0 : i32
    %2 = arith.cmpi ne, %1, %c0_i32_0 : i32
    scf.if %2 {
      %cst_21 = arith.constant 0.000000e+00 : f32
      %43 = vector.broadcast %cst_21 : f32 to vector<8x26xf32>
      %c0_22 = arith.constant 0 : index
      %c0_23 = arith.constant 0 : index
      %44 = vector.load %arg3[%c0_22, %c0_23] : memref<8x26xf32, #tpu.memory_space<vmem>>, vector<8x26xf32>
      tpu.vector_store %arg3[%c0_22, %c0_23], %43 {strides = array<i32>} : memref<8x26xf32, #tpu.memory_space<vmem>>, vector<8x26xf32>,
    } else {
    }
    %c1_i32 = arith.constant 1 : i32
    %3 = arith.muli %arg0, %c1_i32 : i32
    %4 = arith.addi %3, %arg1 : i32
    %c512_i32 = arith.constant 512 : i32
    %5 = arith.muli %4, %c512_i32 : i32
    %6 = tpu.iota {dimensions = array<i32: 0>} : vector<512x26xi32>
    %7 = vector.broadcast %5 : i32 to vector<512x26xi32>
    %8 = arith.addi %7, %6 : vector<512x26xi32>
    %c512_i32_1 = arith.constant 512 : i32
    %9 = vector.broadcast %c512_i32_1 : i32 to vector<512x26xi32>
    %10 = arith.cmpi slt, %8, %9 : vector<512x26xi32>
    %c0 = arith.constant 0 : index
    %c0_2 = arith.constant 0 : index
    %c0_3 = arith.constant 0 : index
    %11 = vector.load %arg2[%c0, %c0_2, %c0_3] : memref<4x512x26xf32, #tpu.memory_space<vmem>>, vector<1x512x26xf32>
    %12 = vector.shape_cast %11 : vector<1x512x26xf32> to vector<512x26xf32>
    %c1 = arith.constant 1 : index
    %c0_4 = arith.constant 0 : index
    %c0_5 = arith.constant 0 : index
    %13 = vector.load %arg2[%c1, %c0_4, %c0_5] : memref<4x512x26xf32, #tpu.memory_space<vmem>>, vector<1x512x26xf32>
    %14 = vector.shape_cast %13 : vector<1x512x26xf32> to vector<512x26xf32>
    %c2 = arith.constant 2 : index
    %c0_6 = arith.constant 0 : index
    %c0_7 = arith.constant 0 : index
    %15 = vector.load %arg2[%c2, %c0_6, %c0_7] : memref<4x512x26xf32, #tpu.memory_space<vmem>>, vector<1x512x26xf32>
    %16 = vector.shape_cast %15 : vector<1x512x26xf32> to vector<512x26xf32>
    %c3 = arith.constant 3 : index
    %c0_8 = arith.constant 0 : index
    %c0_9 = arith.constant 0 : index
    %17 = vector.load %arg2[%c3, %c0_8, %c0_9] : memref<4x512x26xf32, #tpu.memory_space<vmem>>, vector<1x512x26xf32>
    %18 = vector.shape_cast %17 : vector<1x512x26xf32> to vector<512x26xf32>
    %19 = arith.addf %12, %14 : vector<512x26xf32>
    %20 = arith.addf %19, %16 : vector<512x26xf32>
    %21 = arith.addf %20, %18 : vector<512x26xf32>
    %22 = arith.mulf %12, %12 : vector<512x26xf32>
    %23 = arith.mulf %14, %14 : vector<512x26xf32>
    %24 = arith.addf %22, %23 : vector<512x26xf32>
    %25 = arith.mulf %16, %16 : vector<512x26xf32>
    %26 = arith.addf %24, %25 : vector<512x26xf32>
    %27 = arith.mulf %18, %18 : vector<512x26xf32>
    %28 = arith.addf %26, %27 : vector<512x26xf32>
    %cst = arith.constant 0.000000e+00 : f32
    %29 = vector.broadcast %cst : f32 to vector<512x26xf32>
    %30 = arith.select %10, %21, %29 : vector<512x26xi1>, vector<512x26xf32>
    %cst_10 = arith.constant 0.000000e+00 : f32
    %31 = vector.broadcast %cst_10 : f32 to vector<512x26xf32>
    %32 = arith.select %10, %28, %31 : vector<512x26xi1>, vector<512x26xf32>
    %c0_11 = arith.constant 0 : index
    %c0_12 = arith.constant 0 : index
    %33 = vector.load %arg3[%c0_11, %c0_12] : memref<8x26xf32, #tpu.memory_space<vmem>>, vector<1x26xf32>
    %cst_13 = arith.constant dense<0.000000e+00> : vector<26xf32>
    %34 = vector.multi_reduction <add>, %30, %cst_13 [0] : vector<512x26xf32> to vector<26xf32>
    %35 = vector.shape_cast %34 : vector<26xf32> to vector<1x26xf32>
    %36 = arith.addf %33, %35 : vector<1x26xf32>
    %c0_14 = arith.constant 0 : index
    %c0_15 = arith.constant 0 : index
    %37 = vector.load %arg3[%c0_14, %c0_15] : memref<8x26xf32, #tpu.memory_space<vmem>>, vector<1x26xf32>
    tpu.vector_store %arg3[%c0_14, %c0_15], %36 {strides = array<i32>} : memref<8x26xf32, #tpu.memory_space<vmem>>, vector<1x26xf32>,
    %c1_16 = arith.constant 1 : index
    %c0_17 = arith.constant 0 : index
    %38 = vector.load %arg3[%c1_16, %c0_17] : memref<8x26xf32, #tpu.memory_space<vmem>>, vector<1x26xf32>
    %cst_18 = arith.constant dense<0.000000e+00> : vector<26xf32>
    %39 = vector.multi_reduction <add>, %32, %cst_18 [0] : vector<512x26xf32> to vector<26xf32>
    %40 = vector.shape_cast %39 : vector<26xf32> to vector<1x26xf32>
    %41 = arith.addf %38, %40 : vector<1x26xf32>
    %c1_19 = arith.constant 1 : index
    %c0_20 = arith.constant 0 : index
    %42 = vector.load %arg3[%c1_19, %c0_20] : memref<8x26xf32, #tpu.memory_space<vmem>>, vector<1x26xf32>
    tpu.vector_store %arg3[%c1_19, %c0_20], %41 {strides = array<i32>} : memref<8x26xf32, #tpu.memory_space<vmem>>, vector<1x26xf32>,
    return
  }
  func.func @transform_0(%arg0: i32, %arg1: i32) -> (i32, i32, i32) {
    %c1_i32 = arith.constant 1 : i32
    %0 = arith.muli %arg0, %c1_i32 : i32
    %1 = arith.addi %0, %arg1 : i32
    %c0_i32 = arith.constant 0 : i32
    %2 = arith.minsi %1, %c0_i32 : i32
    %c0_i32_0 = arith.constant 0 : i32
    %c0_i32_1 = arith.constant 0 : i32
    %c0_i32_2 = arith.constant 0 : i32
    return %c0_i32_0, %2, %c0_i32_1 : i32, i32, i32
  }
  func.func @transform_1(%arg0: i32, %arg1: i32) -> (i32, i32) {
    %c0_i32 = arith.constant 0 : i32
    %c0_i32_0 = arith.constant 0 : i32
    return %arg0, %c0_i32 : i32, i32
  }
}

</mosaic_0001>

<llo_original>
// kernel: tpu_custom_call.1
$region0: #{tpu_custom_call.1}
  #allocation0 [shape = 'u32[]', space=smem, size = 0x4, offset = 0x4, fixed_abs, tag = 'smem constant byte address 0x4 - core index']
  #allocation1 [shape = 'u32[144,128]{1,0:T(1,128)}', space=vmem, size = 0x12000, scoped, tag = 'internal scratch']
  %s0 = inlined_call_operand.vmem [shape: f32[4,512,26], index: 0, kind: input, shape index: {}]
  %s1 = inlined_call_operand.hbm [shape: f32[8,26], index: 1, kind: output, shape index: {}]
  %s2 = sld [smem:[#allocation0]]
  $region18: #{tpu_custom_call.1} parent=0
    _
  %s4 = ssub.s32 1, %s2
  %s5 = scalar_select 0, %s4, %s2
  $region1: #{tpu_custom_call.1} parent=0
    #allocation2 [shape = 'u8[4096]{0}', space=vmem, size = 0x1000, scoped, tag = 'output window, operand 0, single buffered']
    #allocation3 [shape = 's32[1]{0}', space=sflag, size = 0x4, scoped, tag = 'scoped memory for tpu_custom_call.1']
    %6 = vsyncpa [#allocation3], 0
    // Predicated region
    $region2: #{tpu_custom_call.1} parent=1 // pred_check
      _
    $region3: #{tpu_custom_call.1} parent=1 // pred_check_branch
      %8 = sbr.rel (0) target = $region5
    $region4: #{tpu_custom_call.1} parent=1 // pred_region
      %s9 = sadd.s32 0, 0
      %p10 = scmp.lt.s32.totalorder %s9, 0
      %s11 = scalar_select %p10, %s9, 0
      %s12 = smul.u32 64, %s11
      %p13 = scmp.lt.s32.totalorder %s12, 63
      %s14 = scalar_select %p13, %s12, 63
      %s15 = smul.addr %s14, 8
      %s16 = scalar_lea.vmem %s0, %s15
      %s17 = sadd.s32 0, 0
      %p18 = scmp.lt.s32.totalorder %s17, 0
      %s19 = scalar_select %p18, %s17, 0
      %s20 = smul.u32 64, %s19
    $region5: #{tpu_custom_call.1} parent=1 // pred_fallthru
      _
    %s21 = sadd.s32 0, 0
    %p22 = scmp.lt.s32.totalorder %s21, 0
    %s23 = scalar_select %p22, %s21, 0
    %s24 = smul.u32 64, %s23
    %p25 = scmp.lt.s32.totalorder %s24, 63
    %s26 = scalar_select %p25, %s24, 63
    %s27 = smul.addr %s26, 8
    %s28 = scalar_lea.vmem %s0, %s27
    %s29 = sadd.s32 0, 0
    %p30 = scmp.lt.s32.totalorder %s29, 0
    %s31 = scalar_select %p30, %s29, 0
    %s32 = smul.u32 64, %s31
    %p33 = scmp.lt.s32.totalorder %s32, 63
    %s34 = scalar_select %p33, %s32, 63
    %s35 = smul.addr %s34, 8
    %s36 = scalar_lea.vmem %s0, %s35
    %s37 = sadd.s32 0, 0
    %p38 = scmp.lt.s32.totalorder %s37, 0
    %s39 = scalar_select %p38, %s37, 0
    %s40 = smul.u32 64, %s39
    %p41 = scmp.eq.s32.totalorder 0, 0
    // Predicated region
    $region6: #{tpu_custom_call.1} parent=1 // pred_check
      %p42 = pneg %p41
    $region7: #{tpu_custom_call.1} parent=1 // pred_check_branch
      %44 = sbr.rel (%p42) target = $region9
    $region8: #{tpu_custom_call.1} parent=1 // pred_region
      %vm45 = vcmask 211968
      %46 = vst.msk [vmem:[#allocation2] sm:$0xff] %vm45, 0.0
    $region9: #{tpu_custom_call.1} parent=1 // pred_fallthru
      _
    %s47 = sadd.s32 0, 0
    %s48 = smul.u32 %s47, 512
    %v49 = vlaneseq
    %v50 = vshrl.u32 %v49, 7
    %v51 = vadd.s32 %v50, 8
    %v52 = vadd.s32 %v50, 16
    %v53 = vadd.s32 %v50, 24
    %v54 = vadd.s32 %v50, 32
    %v55 = vadd.s32 %v50, 40
    %v56 = vadd.s32 %v50, 48
    %v57 = vadd.s32 %v50, 56
    %v58 = vadd.s32 %v50, 64
    %v59 = vadd.s32 %v50, 72
    %v60 = vadd.s32 %v50, 80
    %v61 = vadd.s32 %v50, 88
    %v62 = vadd.s32 %v50, 96
    %v63 = vadd.s32 %v50, 104
    %v64 = vadd.s32 %v50, 112
    %v65 = vadd.s32 %v50, 120
    %v66 = vadd.s32 %v50, 128
    %v67 = vadd.s32 %v50, 136
    %v68 = vadd.s32 %v50, 144
    %v69 = vadd.s32 %v50, 152
    %v70 = vadd.s32 %v50, 160
    %v71 = vadd.s32 %v50, 168
    %v72 = vadd.s32 %v50, 176
    %v73 = vadd.s32 %v50, 184
    %v74 = vadd.s32 %v50, 192
    %v75 = vadd.s32 %v50, 200
    %v76 = vadd.s32 %v50, 208
    %v77 = vadd.s32 %v50, 216
    %v78 = vadd.s32 %v50, 224
    %v79 = vadd.s32 %v50, 232
    %v80 = vadd.s32 %v50, 240
    %v81 = vadd.s32 %v50, 248
    %v82 = vadd.s32 %v50, 256
    %v83 = vadd.s32 %v50, 264
    %v84 = vadd.s32 %v50, 272
    %v85 = vadd.s32 %v50, 280
    %v86 = vadd.s32 %v50, 288
    %v87 = vadd.s32 %v50, 296
    %v88 = vadd.s32 %v50, 304
    %v89 = vadd.s32 %v50, 312
    %v90 = vadd.s32 %v50, 320
    %v91 = vadd.s32 %v50, 328
    %v92 = vadd.s32 %v50, 336
    %v93 = vadd.s32 %v50, 344
    %v94 = vadd.s32 %v50, 352
    %v95 = vadd.s32 %v50, 360
    %v96 = vadd.s32 %v50, 368
    %v97 = vadd.s32 %v50, 376
    %v98 = vadd.s32 %v50, 384
    %v99 = vadd.s32 %v50, 392
    %v100 = vadd.s32 %v50, 400
    %v101 = vadd.s32 %v50, 408
    %v102 = vadd.s32 %v50, 416
    %v103 = vadd.s32 %v50, 424
    %v104 = vadd.s32 %v50, 432
    %v105 = vadd.s32 %v50, 440
    %v106 = vadd.s32 %v50, 448
    %v107 = vadd.s32 %v50, 456
    %v108 = vadd.s32 %v50, 464
    %v109 = vadd.s32 %v50, 472
    %v110 = vadd.s32 %v50, 480
    %v111 = vadd.s32 %v50, 488
    %v112 = vadd.s32 %v50, 496
    %v113 = vadd.s32 %v50, 504
    %v114 = vstv %s48
    %v115 = vadd.s32 %v114, %v50
    %v116 = vadd.s32 %v114, %v51
    %v117 = vadd.s32 %v114, %v52
    %v118 = vadd.s32 %v114, %v53
    %v119 = vadd.s32 %v114, %v54
    %v120 = vadd.s32 %v114, %v55
    %v121 = vadd.s32 %v114, %v56
    %v122 = vadd.s32 %v114, %v57
    %v123 = vadd.s32 %v114, %v58
    %v124 = vadd.s32 %v114, %v59
    %v125 = vadd.s32 %v114, %v60
    %v126 = vadd.s32 %v114, %v61
    %v127 = vadd.s32 %v114, %v62
    %v128 = vadd.s32 %v114, %v63
    %v129 = vadd.s32 %v114, %v64
    %v130 = vadd.s32 %v114, %v65
    %v131 = vadd.s32 %v114, %v66
    %v132 = vadd.s32 %v114, %v67
    %v133 = vadd.s32 %v114, %v68
    %v134 = vadd.s32 %v114, %v69
    %v135 = vadd.s32 %v114, %v70
    %v136 = vadd.s32 %v114, %v71
    %v137 = vadd.s32 %v114, %v72
    %v138 = vadd.s32 %v114, %v73
    %v139 = vadd.s32 %v114, %v74
    %v140 = vadd.s32 %v114, %v75
    %v141 = vadd.s32 %v114, %v76
    %v142 = vadd.s32 %v114, %v77
    %v143 = vadd.s32 %v114, %v78
    %v144 = vadd.s32 %v114, %v79
    %v145 = vadd.s32 %v114, %v80
    %v146 = vadd.s32 %v114, %v81
    %v147 = vadd.s32 %v114, %v82
    %v148 = vadd.s32 %v114, %v83
    %v149 = vadd.s32 %v114, %v84
    %v150 = vadd.s32 %v114, %v85
    %v151 = vadd.s32 %v114, %v86
    %v152 = vadd.s32 %v114, %v87
    %v153 = vadd.s32 %v114, %v88
    %v154 = vadd.s32 %v114, %v89
    %v155 = vadd.s32 %v114, %v90
    %v156 = vadd.s32 %v114, %v91
    %v157 = vadd.s32 %v114, %v92
    %v158 = vadd.s32 %v114, %v93
    %v159 = vadd.s32 %v114, %v94
    %v160 = vadd.s32 %v114, %v95
    %v161 = vadd.s32 %v114, %v96
    %v162 = vadd.s32 %v114, %v97
    %v163 = vadd.s32 %v114, %v98
    %v164 = vadd.s32 %v114, %v99
    %v165 = vadd.s32 %v114, %v100
    %v166 = vadd.s32 %v114, %v101
    %v167 = vadd.s32 %v114, %v102
    %v168 = vadd.s32 %v114, %v103
    %v169 = vadd.s32 %v114, %v104
    %v170 = vadd.s32 %v114, %v105
    %v171 = vadd.s32 %v114, %v106
    %v172 = vadd.s32 %v114, %v107
    %v173 = vadd.s32 %v114, %v108
    %v174 = vadd.s32 %v114, %v109
    %v175 = vadd.s32 %v114, %v110
    %v176 = vadd.s32 %v114, %v111
    %v177 = vadd.s32 %v114, %v112
    %v178 = vadd.s32 %v114, %v113
    %vm179 = vcmp.lt.s32.totalorder %v115, 512
    %vm180 = vcmp.lt.s32.totalorder %v116, 512
    %vm181 = vcmp.lt.s32.totalorder %v117, 512
    %vm182 = vcmp.lt.s32.totalorder %v118, 512
    %vm183 = vcmp.lt.s32.totalorder %v119, 512
    %vm184 = vcmp.lt.s32.totalorder %v120, 512
    %vm185 = vcmp.lt.s32.totalorder %v121, 512
    %vm186 = vcmp.lt.s32.totalorder %v122, 512
    %vm187 = vcmp.lt.s32.totalorder %v123, 512
    %vm188 = vcmp.lt.s32.totalorder %v124, 512
    %vm189 = vcmp.lt.s32.totalorder %v125, 512
    %vm190 = vcmp.lt.s32.totalorder %v126, 512
    %vm191 = vcmp.lt.s32.totalorder %v127, 512
    %vm192 = vcmp.lt.s32.totalorder %v128, 512
    %vm193 = vcmp.lt.s32.totalorder %v129, 512
    %vm194 = vcmp.lt.s32.totalorder %v130, 512
    %vm195 = vcmp.lt.s32.totalorder %v131, 512
    %vm196 = vcmp.lt.s32.totalorder %v132, 512
    %vm197 = vcmp.lt.s32.totalorder %v133, 512
    %vm198 = vcmp.lt.s32.totalorder %v134, 512
    %vm199 = vcmp.lt.s32.totalorder %v135, 512
    %vm200 = vcmp.lt.s32.totalorder %v136, 512
    %vm201 = vcmp.lt.s32.totalorder %v137, 512
    %vm202 = vcmp.lt.s32.totalorder %v138, 512
    %vm203 = vcmp.lt.s32.totalorder %v139, 512
    %vm204 = vcmp.lt.s32.totalorder %v140, 512
    %vm205 = vcmp.lt.s32.totalorder %v141, 512
    %vm206 = vcmp.lt.s32.totalorder %v142, 512
    %vm207 = vcmp.lt.s32.totalorder %v143, 512
    %vm208 = vcmp.lt.s32.totalorder %v144, 512
    %vm209 = vcmp.lt.s32.totalorder %v145, 512
    %vm210 = vcmp.lt.s32.totalorder %v146, 512
    %vm211 = vcmp.lt.s32.totalorder %v147, 512
    %vm212 = vcmp.lt.s32.totalorder %v148, 512
    %vm213 = vcmp.lt.s32.totalorder %v149, 512
    %vm214 = vcmp.lt.s32.totalorder %v150, 512
    %vm215 = vcmp.lt.s32.totalorder %v151, 512
    %vm216 = vcmp.lt.s32.totalorder %v152, 512
    %vm217 = vcmp.lt.s32.totalorder %v153, 512
    %vm218 = vcmp.lt.s32.totalorder %v154, 512
    %vm219 = vcmp.lt.s32.totalorder %v155, 512
    %vm220 = vcmp.lt.s32.totalorder %v156, 512
    %vm221 = vcmp.lt.s32.totalorder %v157, 512
    %vm222 = vcmp.lt.s32.totalorder %v158, 512
    %vm223 = vcmp.lt.s32.totalorder %v159, 512
    %vm224 = vcmp.lt.s32.totalorder %v160, 512
    %vm225 = vcmp.lt.s32.totalorder %v161, 512
    %vm226 = vcmp.lt.s32.totalorder %v162, 512
    %vm227 = vcmp.lt.s32.totalorder %v163, 512
    %vm228 = vcmp.lt.s32.totalorder %v164, 512
    %vm229 = vcmp.lt.s32.totalorder %v165, 512
    %vm230 = vcmp.lt.s32.totalorder %v166, 512
    %vm231 = vcmp.lt.s32.totalorder %v167, 512
    %vm232 = vcmp.lt.s32.totalorder %v168, 512
    %vm233 = vcmp.lt.s32.totalorder %v169, 512
    %vm234 = vcmp.lt.s32.totalorder %v170, 512
    %vm235 = vcmp.lt.s32.totalorder %v171, 512
    %vm236 = vcmp.lt.s32.totalorder %v172, 512
    %vm237 = vcmp.lt.s32.totalorder %v173, 512
    %vm238 = vcmp.lt.s32.totalorder %v174, 512
    %vm239 = vcmp.lt.s32.totalorder %v175, 512
    %vm240 = vcmp.lt.s32.totalorder %v176, 512
    %vm241 = vcmp.lt.s32.totalorder %v177, 512
    %vm242 = vcmp.lt.s32.totalorder %v178, 512
    %v243 = vld [vmem:[%s36] sm:$0xff]
    %v244 = vld [vmem:[%s36 + $0x8] sm:$0xff]
    %v245 = vld [vmem:[%s36 + $0x10] sm:$0xff]
    %v246 = vld [vmem:[%s36 + $0x18] sm:$0xff]
    %v247 = vld [vmem:[%s36 + $0x20] sm:$0xff]
    %v248 = vld [vmem:[%s36 + $0x28] sm:$0xff]
    %v249 = vld [vmem:[%s36 + $0x30] sm:$0xff]
    %v250 = vld [vmem:[%s36 + $0x38] sm:$0xff]
    %v251 = vld [vmem:[%s36 + $0x40] sm:$0xff]
    %v252 = vld [vmem:[%s36 + $0x48] sm:$0xff]
    %v253 = vld [vmem:[%s36 + $0x50] sm:$0xff]
    %v254 = vld [vmem:[%s36 + $0x58] sm:$0xff]
    %v255 = vld [vmem:[%s36 + $0x60] sm:$0xff]
    %v256 = vld [vmem:[%s36 + $0x68] sm:$0xff]
    %v257 = vld [vmem:[%s36 + $0x70] sm:$0xff]
    %v258 = vld [vmem:[%s36 + $0x78] sm:$0xff]
    %v259 = vld [vmem:[%s36 + $0x80] sm:$0xff]
    %v260 = vld [vmem:[%s36 + $0x88] sm:$0xff]
    %v261 = vld [vmem:[%s36 + $0x90] sm:$0xff]
    %v262 = vld [vmem:[%s36 + $0x98] sm:$0xff]
    %v263 = vld [vmem:[%s36 + $0xa0] sm:$0xff]
    %v264 = vld [vmem:[%s36 + $0xa8] sm:$0xff]
    %v265 = vld [vmem:[%s36 + $0xb0] sm:$0xff]
    %v266 = vld [vmem:[%s36 + $0xb8] sm:$0xff]
    %v267 = vld [vmem:[%s36 + $0xc0] sm:$0xff]
    %v268 = vld [vmem:[%s36 + $0xc8] sm:$0xff]
    %v269 = vld [vmem:[%s36 + $0xd0] sm:$0xff]
    %v270 = vld [vmem:[%s36 + $0xd8] sm:$0xff]
    %v271 = vld [vmem:[%s36 + $0xe0] sm:$0xff]
    %v272 = vld [vmem:[%s36 + $0xe8] sm:$0xff]
    %v273 = vld [vmem:[%s36 + $0xf0] sm:$0xff]
    %v274 = vld [vmem:[%s36 + $0xf8] sm:$0xff]
    %v275 = vld [vmem:[%s36 + $0x100] sm:$0xff]
    %v276 = vld [vmem:[%s36 + $0x108] sm:$0xff]
    %v277 = vld [vmem:[%s36 + $0x110] sm:$0xff]
    %v278 = vld [vmem:[%s36 + $0x118] sm:$0xff]
    %v279 = vld [vmem:[%s36 + $0x120] sm:$0xff]
    %v280 = vld [vmem:[%s36 + $0x128] sm:$0xff]
    %v281 = vld [vmem:[%s36 + $0x130] sm:$0xff]
    %v282 = vld [vmem:[%s36 + $0x138] sm:$0xff]
    %v283 = vld [vmem:[%s36 + $0x140] sm:$0xff]
    %v284 = vld [vmem:[%s36 + $0x148] sm:$0xff]
    %v285 = vld [vmem:[%s36 + $0x150] sm:$0xff]
    %v286 = vld [vmem:[%s36 + $0x158] sm:$0xff]
    %v287 = vld [vmem:[%s36 + $0x160] sm:$0xff]
    %v288 = vld [vmem:[%s36 + $0x168] sm:$0xff]
    %v289 = vld [vmem:[%s36 + $0x170] sm:$0xff]
    %v290 = vld [vmem:[%s36 + $0x178] sm:$0xff]
    %v291 = vld [vmem:[%s36 + $0x180] sm:$0xff]
    %v292 = vld [vmem:[%s36 + $0x188] sm:$0xff]
    %v293 = vld [vmem:[%s36 + $0x190] sm:$0xff]
    %v294 = vld [vmem:[%s36 + $0x198] sm:$0xff]
    %v295 = vld [vmem:[%s36 + $0x1a0] sm:$0xff]
    %v296 = vld [vmem:[%s36 + $0x1a8] sm:$0xff]
    %v297 = vld [vmem:[%s36 + $0x1b0] sm:$0xff]
    %v298 = vld [vmem:[%s36 + $0x1b8] sm:$0xff]
    %v299 = vld [vmem:[%s36 + $0x1c0] sm:$0xff]
    %v300 = vld [vmem:[%s36 + $0x1c8] sm:$0xff]
    %v301 = vld [vmem:[%s36 + $0x1d0] sm:$0xff]
    %v302 = vld [vmem:[%s36 + $0x1d8] sm:$0xff]
    %v303 = vld [vmem:[%s36 + $0x1e0] sm:$0xff]
    %v304 = vld [vmem:[%s36 + $0x1e8] sm:$0xff]
    %v305 = vld [vmem:[%s36 + $0x1f0] sm:$0xff]
    %v306 = vld [vmem:[%s36 + $0x1f8] sm:$0xff]
    %s307 = scalar_lea.vmem %s36, 512
    %v308 = vld [vmem:[%s307] sm:$0xff]
    %v309 = vld [vmem:[%s307 + $0x8] sm:$0xff]
    %v310 = vld [vmem:[%s307 + $0x10] sm:$0xff]
    %v311 = vld [vmem:[%s307 + $0x18] sm:$0xff]
    %v312 = vld [vmem:[%s307 + $0x20] sm:$0xff]
    %v313 = vld [vmem:[%s307 + $0x28] sm:$0xff]
    %v314 = vld [vmem:[%s307 + $0x30] sm:$0xff]
    %v315 = vld [vmem:[%s307 + $0x38] sm:$0xff]
    %v316 = vld [vmem:[%s307 + $0x40] sm:$0xff]
    %v317 = vld [vmem:[%s307 + $0x48] sm:$0xff]
    %v318 = vld [vmem:[%s307 + $0x50] sm:$0xff]
    %v319 = vld [vmem:[%s307 + $0x58] sm:$0xff]
    %v320 = vld [vmem:[%s307 + $0x60] sm:$0xff]
    %v321 = vld [vmem:[%s307 + $0x68] sm:$0xff]
    %v322 = vld [vmem:[%s307 + $0x70] sm:$0xff]
    %v323 = vld [vmem:[%s307 + $0x78] sm:$0xff]
    %v324 = vld [vmem:[%s307 + $0x80] sm:$0xff]
    %v325 = vld [vmem:[%s307 + $0x88] sm:$0xff]
    %v326 = vld [vmem:[%s307 + $0x90] sm:$0xff]
    %v327 = vld [vmem:[%s307 + $0x98] sm:$0xff]
    %v328 = vld [vmem:[%s307 + $0xa0] sm:$0xff]
    %v329 = vld [vmem:[%s307 + $0xa8] sm:$0xff]
    %v330 = vld [vmem:[%s307 + $0xb0] sm:$0xff]
    %v331 = vld [vmem:[%s307 + $0xb8] sm:$0xff]
    %v332 = vld [vmem:[%s307 + $0xc0] sm:$0xff]
    %v333 = vld [vmem:[%s307 + $0xc8] sm:$0xff]
    %v334 = vld [vmem:[%s307 + $0xd0] sm:$0xff]
    %v335 = vld [vmem:[%s307 + $0xd8] sm:$0xff]
    %v336 = vld [vmem:[%s307 + $0xe0] sm:$0xff]
    %v337 = vld [vmem:[%s307 + $0xe8] sm:$0xff]
    %v338 = vld [vmem:[%s307 + $0xf0] sm:$0xff]
    %v339 = vld [vmem:[%s307 + $0xf8] sm:$0xff]
    %v340 = vld [vmem:[%s307 + $0x100] sm:$0xff]
    %v341 = vld [vmem:[%s307 + $0x108] sm:$0xff]
    %v342 = vld [vmem:[%s307 + $0x110] sm:$0xff]
    %v343 = vld [vmem:[%s307 + $0x118] sm:$0xff]
    %v344 = vld [vmem:[%s307 + $0x120] sm:$0xff]
    %v345 = vld [vmem:[%s307 + $0x128] sm:$0xff]
    %v346 = vld [vmem:[%s307 + $0x130] sm:$0xff]
    %v347 = vld [vmem:[%s307 + $0x138] sm:$0xff]
    %v348 = vld [vmem:[%s307 + $0x140] sm:$0xff]
    %v349 = vld [vmem:[%s307 + $0x148] sm:$0xff]
    %v350 = vld [vmem:[%s307 + $0x150] sm:$0xff]
    %v351 = vld [vmem:[%s307 + $0x158] sm:$0xff]
    %v352 = vld [vmem:[%s307 + $0x160] sm:$0xff]
    %v353 = vld [vmem:[%s307 + $0x168] sm:$0xff]
    %v354 = vld [vmem:[%s307 + $0x170] sm:$0xff]
    %v355 = vld [vmem:[%s307 + $0x178] sm:$0xff]
    %v356 = vld [vmem:[%s307 + $0x180] sm:$0xff]
    %v357 = vld [vmem:[%s307 + $0x188] sm:$0xff]
    %v358 = vld [vmem:[%s307 + $0x190] sm:$0xff]
    %v359 = vld [vmem:[%s307 + $0x198] sm:$0xff]
    %v360 = vld [vmem:[%s307 + $0x1a0] sm:$0xff]
    %v361 = vld [vmem:[%s307 + $0x1a8] sm:$0xff]
    %v362 = vld [vmem:[%s307 + $0x1b0] sm:$0xff]
    %v363 = vld [vmem:[%s307 + $0x1b8] sm:$0xff]
    %v364 = vld [vmem:[%s307 + $0x1c0] sm:$0xff]
    %v365 = vld [vmem:[%s307 + $0x1c8] sm:$0xff]
    %v366 = vld [vmem:[%s307 + $0x1d0] sm:$0xff]
    %v367 = vld [vmem:[%s307 + $0x1d8] sm:$0xff]
    %v368 = vld [vmem:[%s307 + $0x1e0] sm:$0xff]
    %v369 = vld [vmem:[%s307 + $0x1e8] sm:$0xff]
    %v370 = vld [vmem:[%s307 + $0x1f0] sm:$0xff]
    %v371 = vld [vmem:[%s307 + $0x1f8] sm:$0xff]
    %s372 = scalar_lea.vmem %s36, 1024
    %v373 = vld [vmem:[%s372] sm:$0xff]
    %v374 = vld [vmem:[%s372 + $0x8] sm:$0xff]
    %v375 = vld [vmem:[%s372 + $0x10] sm:$0xff]
    %v376 = vld [vmem:[%s372 + $0x18] sm:$0xff]
    %v377 = vld [vmem:[%s372 + $0x20] sm:$0xff]
    %v378 = vld [vmem:[%s372 + $0x28] sm:$0xff]
    %v379 = vld [vmem:[%s372 + $0x30] sm:$0xff]
    %v380 = vld [vmem:[%s372 + $0x38] sm:$0xff]
    %v381 = vld [vmem:[%s372 + $0x40] sm:$0xff]
    %v382 = vld [vmem:[%s372 + $0x48] sm:$0xff]
    %v383 = vld [vmem:[%s372 + $0x50] sm:$0xff]
    %v384 = vld [vmem:[%s372 + $0x58] sm:$0xff]
    %v385 = vld [vmem:[%s372 + $0x60] sm:$0xff]
    %v386 = vld [vmem:[%s372 + $0x68] sm:$0xff]
    %v387 = vld [vmem:[%s372 + $0x70] sm:$0xff]
    %v388 = vld [vmem:[%s372 + $0x78] sm:$0xff]
    %v389 = vld [vmem:[%s372 + $0x80] sm:$0xff]
    %v390 = vld [vmem:[%s372 + $0x88] sm:$0xff]
    %v391 = vld [vmem:[%s372 + $0x90] sm:$0xff]
    %v392 = vld [vmem:[%s372 + $0x98] sm:$0xff]
    %v393 = vld [vmem:[%s372 + $0xa0] sm:$0xff]
    %v394 = vld [vmem:[%s372 + $0xa8] sm:$0xff]
    %v395 = vld [vmem:[%s372 + $0xb0] sm:$0xff]
    %v396 = vld [vmem:[%s372 + $0xb8] sm:$0xff]
    %v397 = vld [vmem:[%s372 + $0xc0] sm:$0xff]
    %v398 = vld [vmem:[%s372 + $0xc8] sm:$0xff]
    %v399 = vld [vmem:[%s372 + $0xd0] sm:$0xff]
    %v400 = vld [vmem:[%s372 + $0xd8] sm:$0xff]
    %v401 = vld [vmem:[%s372 + $0xe0] sm:$0xff]
    %v402 = vld [vmem:[%s372 + $0xe8] sm:$0xff]
    %v403 = vld [vmem:[%s372 + $0xf0] sm:$0xff]
    %v404 = vld [vmem:[%s372 + $0xf8] sm:$0xff]
    %v405 = vld [vmem:[%s372 + $0x100] sm:$0xff]
    %v406 = vld [vmem:[%s372 + $0x108] sm:$0xff]
    %v407 = vld [vmem:[%s372 + $0x110] sm:$0xff]
    %v408 = vld [vmem:[%s372 + $0x118] sm:$0xff]
    %v409 = vld [vmem:[%s372 + $0x120] sm:$0xff]
    %v410 = vld [vmem:[%s372 + $0x128] sm:$0xff]
    %v411 = vld [vmem:[%s372 + $0x130] sm:$0xff]
    %v412 = vld [vmem:[%s372 + $0x138] sm:$0xff]
    %v413 = vld [vmem:[%s372 + $0x140] sm:$0xff]
    %v414 = vld [vmem:[%s372 + $0x148] sm:$0xff]
    %v415 = vld [vmem:[%s372 + $0x150] sm:$0xff]
    %v416 = vld [vmem:[%s372 + $0x158] sm:$0xff]
    %v417 = vld [vmem:[%s372 + $0x160] sm:$0xff]
    %v418 = vld [vmem:[%s372 + $0x168] sm:$0xff]
    %v419 = vld [vmem:[%s372 + $0x170] sm:$0xff]
    %v420 = vld [vmem:[%s372 + $0x178] sm:$0xff]
    %v421 = vld [vmem:[%s372 + $0x180] sm:$0xff]
    %v422 = vld [vmem:[%s372 + $0x188] sm:$0xff]
    %v423 = vld [vmem:[%s372 + $0x190] sm:$0xff]
    %v424 = vld [vmem:[%s372 + $0x198] sm:$0xff]
    %v425 = vld [vmem:[%s372 + $0x1a0] sm:$0xff]
    %v426 = vld [vmem:[%s372 + $0x1a8] sm:$0xff]
    %v427 = vld [vmem:[%s372 + $0x1b0] sm:$0xff]
    %v428 = vld [vmem:[%s372 + $0x1b8] sm:$0xff]
    %v429 = vld [vmem:[%s372 + $0x1c0] sm:$0xff]
    %v430 = vld [vmem:[%s372 + $0x1c8] sm:$0xff]
    %v431 = vld [vmem:[%s372 + $0x1d0] sm:$0xff]
    %v432 = vld [vmem:[%s372 + $0x1d8] sm:$0xff]
    %v433 = vld [vmem:[%s372 + $0x1e0] sm:$0xff]
    %v434 = vld [vmem:[%s372 + $0x1e8] sm:$0xff]
    %v435 = vld [vmem:[%s372 + $0x1f0] sm:$0xff]
    %v436 = vld [vmem:[%s372 + $0x1f8] sm:$0xff]
    %s437 = scalar_lea.vmem %s36, 1536
    %v438 = vld [vmem:[%s437] sm:$0xff]
    %v439 = vld [vmem:[%s437 + $0x8] sm:$0xff]
    %v440 = vld [vmem:[%s437 + $0x10] sm:$0xff]
    %v441 = vld [vmem:[%s437 + $0x18] sm:$0xff]
    %v442 = vld [vmem:[%s437 + $0x20] sm:$0xff]
    %v443 = vld [vmem:[%s437 + $0x28] sm:$0xff]
    %v444 = vld [vmem:[%s437 + $0x30] sm:$0xff]
    %v445 = vld [vmem:[%s437 + $0x38] sm:$0xff]
    %v446 = vld [vmem:[%s437 + $0x40] sm:$0xff]
    %v447 = vld [vmem:[%s437 + $0x48] sm:$0xff]
    %v448 = vld [vmem:[%s437 + $0x50] sm:$0xff]
    %v449 = vld [vmem:[%s437 + $0x58] sm:$0xff]
    %v450 = vld [vmem:[%s437 + $0x60] sm:$0xff]
    %v451 = vld [vmem:[%s437 + $0x68] sm:$0xff]
    %v452 = vld [vmem:[%s437 + $0x70] sm:$0xff]
    %v453 = vld [vmem:[%s437 + $0x78] sm:$0xff]
    %v454 = vld [vmem:[%s437 + $0x80] sm:$0xff]
    %v455 = vld [vmem:[%s437 + $0x88] sm:$0xff]
    %v456 = vld [vmem:[%s437 + $0x90] sm:$0xff]
    %v457 = vld [vmem:[%s437 + $0x98] sm:$0xff]
    %v458 = vld [vmem:[%s437 + $0xa0] sm:$0xff]
    %v459 = vld [vmem:[%s437 + $0xa8] sm:$0xff]
    %v460 = vld [vmem:[%s437 + $0xb0] sm:$0xff]
    %v461 = vld [vmem:[%s437 + $0xb8] sm:$0xff]
    %v462 = vld [vmem:[%s437 + $0xc0] sm:$0xff]
    %v463 = vld [vmem:[%s437 + $0xc8] sm:$0xff]
    %v464 = vld [vmem:[%s437 + $0xd0] sm:$0xff]
    %v465 = vld [vmem:[%s437 + $0xd8] sm:$0xff]
    %v466 = vld [vmem:[%s437 + $0xe0] sm:$0xff]
    %v467 = vld [vmem:[%s437 + $0xe8] sm:$0xff]
    %v468 = vld [vmem:[%s437 + $0xf0] sm:$0xff]
    %v469 = vld [vmem:[%s437 + $0xf8] sm:$0xff]
    %v470 = vld [vmem:[%s437 + $0x100] sm:$0xff]
    %v471 = vld [vmem:[%s437 + $0x108] sm:$0xff]
    %v472 = vld [vmem:[%s437 + $0x110] sm:$0xff]
    %v473 = vld [vmem:[%s437 + $0x118] sm:$0xff]
    %v474 = vld [vmem:[%s437 + $0x120] sm:$0xff]
    %v475 = vld [vmem:[%s437 + $0x128] sm:$0xff]
    %v476 = vld [vmem:[%s437 + $0x130] sm:$0xff]
    %v477 = vld [vmem:[%s437 + $0x138] sm:$0xff]
    %v478 = vld [vmem:[%s437 + $0x140] sm:$0xff]
    %v479 = vld [vmem:[%s437 + $0x148] sm:$0xff]
    %v480 = vld [vmem:[%s437 + $0x150] sm:$0xff]
    %v481 = vld [vmem:[%s437 + $0x158] sm:$0xff]
    %v482 = vld [vmem:[%s437 + $0x160] sm:$0xff]
    %v483 = vld [vmem:[%s437 + $0x168] sm:$0xff]
    %v484 = vld [vmem:[%s437 + $0x170] sm:$0xff]
    %v485 = vld [vmem:[%s437 + $0x178] sm:$0xff]
    %v486 = vld [vmem:[%s437 + $0x180] sm:$0xff]
    %v487 = vld [vmem:[%s437 + $0x188] sm:$0xff]
    %v488 = vld [vmem:[%s437 + $0x190] sm:$0xff]
    %v489 = vld [vmem:[%s437 + $0x198] sm:$0xff]
    %v490 = vld [vmem:[%s437 + $0x1a0] sm:$0xff]
    %v491 = vld [vmem:[%s437 + $0x1a8] sm:$0xff]
    %v492 = vld [vmem:[%s437 + $0x1b0] sm:$0xff]
    %v493 = vld [vmem:[%s437 + $0x1b8] sm:$0xff]
    %v494 = vld [vmem:[%s437 + $0x1c0] sm:$0xff]
    %v495 = vld [vmem:[%s437 + $0x1c8] sm:$0xff]
    %v496 = vld [vmem:[%s437 + $0x1d0] sm:$0xff]
    %v497 = vld [vmem:[%s437 + $0x1d8] sm:$0xff]
    %v498 = vld [vmem:[%s437 + $0x1e0] sm:$0xff]
    %v499 = vld [vmem:[%s437 + $0x1e8] sm:$0xff]
    %v500 = vld [vmem:[%s437 + $0x1f0] sm:$0xff]
    %v501 = vld [vmem:[%s437 + $0x1f8] sm:$0xff]
    %v502 = vadd.f32 %v243, %v308
    %v503 = vadd.f32 %v244, %v309
    %v504 = vadd.f32 %v245, %v310
    %v505 = vadd.f32 %v246, %v311
    %v506 = vadd.f32 %v247, %v312
    %v507 = vadd.f32 %v248, %v313
    %v508 = vadd.f32 %v249, %v314
    %v509 = vadd.f32 %v250, %v315
    %v510 = vadd.f32 %v251, %v316
    %v511 = vadd.f32 %v252, %v317
    %v512 = vadd.f32 %v253, %v318
    %v513 = vadd.f32 %v254, %v319
    %v514 = vadd.f32 %v255, %v320
    %v515 = vadd.f32 %v256, %v321
    %v516 = vadd.f32 %v257, %v322
    %v517 = vadd.f32 %v258, %v323
    %v518 = vadd.f32 %v259, %v324
    %v519 = vadd.f32 %v260, %v325
    %v520 = vadd.f32 %v261, %v326
    %v521 = vadd.f32 %v262, %v327
    %v522 = vadd.f32 %v263, %v328
    %v523 = vadd.f32 %v264, %v329
    %v524 = vadd.f32 %v265, %v330
    %v525 = vadd.f32 %v266, %v331
    %v526 = vadd.f32 %v267, %v332
    %v527 = vadd.f32 %v268, %v333
    %v528 = vadd.f32 %v269, %v334
    %v529 = vadd.f32 %v270, %v335
    %v530 = vadd.f32 %v271, %v336
    %v531 = vadd.f32 %v272, %v337
    %v532 = vadd.f32 %v273, %v338
    %v533 = vadd.f32 %v274, %v339
    %v534 = vadd.f32 %v275, %v340
    %v535 = vadd.f32 %v276, %v341
    %v536 = vadd.f32 %v277, %v342
    %v537 = vadd.f32 %v278, %v343
    %v538 = vadd.f32 %v279, %v344
    %v539 = vadd.f32 %v280, %v345
    %v540 = vadd.f32 %v281, %v346
    %v541 = vadd.f32 %v282, %v347
    %v542 = vadd.f32 %v283, %v348
    %v543 = vadd.f32 %v284, %v349
    %v544 = vadd.f32 %v285, %v350
    %v545 = vadd.f32 %v286, %v351
    %v546 = vadd.f32 %v287, %v352
    %v547 = vadd.f32 %v288, %v353
    %v548 = vadd.f32 %v289, %v354
    %v549 = vadd.f32 %v290, %v355
    %v550 = vadd.f32 %v291, %v356
    %v551 = vadd.f32 %v292, %v357
    %v552 = vadd.f32 %v293, %v358
    %v553 = vadd.f32 %v294, %v359
    %v554 = vadd.f32 %v295, %v360
    %v555 = vadd.f32 %v296, %v361
    %v556 = vadd.f32 %v297, %v362
    %v557 = vadd.f32 %v298, %v363
    %v558 = vadd.f32 %v299, %v364
    %v559 = vadd.f32 %v300, %v365
    %v560 = vadd.f32 %v301, %v366
    %v561 = vadd.f32 %v302, %v367
    %v562 = vadd.f32 %v303, %v368
    %v563 = vadd.f32 %v304, %v369
    %v564 = vadd.f32 %v305, %v370
    %v565 = vadd.f32 %v306, %v371
    %v566 = vadd.f32 %v502, %v373
    %v567 = vadd.f32 %v503, %v374
    %v568 = vadd.f32 %v504, %v375
    %v569 = vadd.f32 %v505, %v376
    %v570 = vadd.f32 %v506, %v377
    %v571 = vadd.f32 %v507, %v378
    %v572 = vadd.f32 %v508, %v379
    %v573 = vadd.f32 %v509, %v380
    %v574 = vadd.f32 %v510, %v381
    %v575 = vadd.f32 %v511, %v382
    %v576 = vadd.f32 %v512, %v383
    %v577 = vadd.f32 %v513, %v384
    %v578 = vadd.f32 %v514, %v385
    %v579 = vadd.f32 %v515, %v386
    %v580 = vadd.f32 %v516, %v387
    %v581 = vadd.f32 %v517, %v388
    %v582 = vadd.f32 %v518, %v389
    %v583 = vadd.f32 %v519, %v390
    %v584 = vadd.f32 %v520, %v391
    %v585 = vadd.f32 %v521, %v392
    %v586 = vadd.f32 %v522, %v393
    %v587 = vadd.f32 %v523, %v394
    %v588 = vadd.f32 %v524, %v395
    %v589 = vadd.f32 %v525, %v396
    %v590 = vadd.f32 %v526, %v397
    %v591 = vadd.f32 %v527, %v398
    %v592 = vadd.f32 %v528, %v399
    %v593 = vadd.f32 %v529, %v400
    %v594 = vadd.f32 %v530, %v401
    %v595 = vadd.f32 %v531, %v402
    %v596 = vadd.f32 %v532, %v403
    %v597 = vadd.f32 %v533, %v404
    %v598 = vadd.f32 %v534, %v405
    %v599 = vadd.f32 %v535, %v406
    %v600 = vadd.f32 %v536, %v407
    %v601 = vadd.f32 %v537, %v408
    %v602 = vadd.f32 %v538, %v409
    %v603 = vadd.f32 %v539, %v410
    %v604 = vadd.f32 %v540, %v411
    %v605 = vadd.f32 %v541, %v412
    %v606 = vadd.f32 %v542, %v413
    %v607 = vadd.f32 %v543, %v414
    %v608 = vadd.f32 %v544, %v415
    %v609 = vadd.f32 %v545, %v416
    %v610 = vadd.f32 %v546, %v417
    %v611 = vadd.f32 %v547, %v418
    %v612 = vadd.f32 %v548, %v419
    %v613 = vadd.f32 %v549, %v420
    %v614 = vadd.f32 %v550, %v421
    %v615 = vadd.f32 %v551, %v422
    %v616 = vadd.f32 %v552, %v423
    %v617 = vadd.f32 %v553, %v424
    %v618 = vadd.f32 %v554, %v425
    %v619 = vadd.f32 %v555, %v426
    %v620 = vadd.f32 %v556, %v427
    %v621 = vadd.f32 %v557, %v428
    %v622 = vadd.f32 %v558, %v429
    %v623 = vadd.f32 %v559, %v430
    %v624 = vadd.f32 %v560, %v431
    %v625 = vadd.f32 %v561, %v432
    %v626 = vadd.f32 %v562, %v433
    %v627 = vadd.f32 %v563, %v434
    %v628 = vadd.f32 %v564, %v435
    %v629 = vadd.f32 %v565, %v436
    %v630 = vadd.f32 %v566, %v438
    %v631 = vadd.f32 %v567, %v439
    %v632 = vadd.f32 %v568, %v440
    %v633 = vadd.f32 %v569, %v441
    %v634 = vadd.f32 %v570, %v442
    %v635 = vadd.f32 %v571, %v443
    %v636 = vadd.f32 %v572, %v444
    %v637 = vadd.f32 %v573, %v445
    %v638 = vadd.f32 %v574, %v446
    %v639 = vadd.f32 %v575, %v447
    %v640 = vadd.f32 %v576, %v448
    %v641 = vadd.f32 %v577, %v449
    %v642 = vadd.f32 %v578, %v450
    %v643 = vadd.f32 %v579, %v451
    %v644 = vadd.f32 %v580, %v452
    %v645 = vadd.f32 %v581, %v453
    %v646 = vadd.f32 %v582, %v454
    %v647 = vadd.f32 %v583, %v455
    %v648 = vadd.f32 %v584, %v456
    %v649 = vadd.f32 %v585, %v457
    %v650 = vadd.f32 %v586, %v458
    %v651 = vadd.f32 %v587, %v459
    %v652 = vadd.f32 %v588, %v460
    %v653 = vadd.f32 %v589, %v461
    %v654 = vadd.f32 %v590, %v462
    %v655 = vadd.f32 %v591, %v463
    %v656 = vadd.f32 %v592, %v464
    %v657 = vadd.f32 %v593, %v465
    %v658 = vadd.f32 %v594, %v466
    %v659 = vadd.f32 %v595, %v467
    %v660 = vadd.f32 %v596, %v468
    %v661 = vadd.f32 %v597, %v469
    %v662 = vadd.f32 %v598, %v470
    %v663 = vadd.f32 %v599, %v471
    %v664 = vadd.f32 %v600, %v472
    %v665 = vadd.f32 %v601, %v473
    %v666 = vadd.f32 %v602, %v474
    %v667 = vadd.f32 %v603, %v475
    %v668 = vadd.f32 %v604, %v476
    %v669 = vadd.f32 %v605, %v477
    %v670 = vadd.f32 %v606, %v478
    %v671 = vadd.f32 %v607, %v479
    %v672 = vadd.f32 %v608, %v480
    %v673 = vadd.f32 %v609, %v481
    %v674 = vadd.f32 %v610, %v482
    %v675 = vadd.f32 %v611, %v483
    %v676 = vadd.f32 %v612, %v484
    %v677 = vadd.f32 %v613, %v485
    %v678 = vadd.f32 %v614, %v486
    %v679 = vadd.f32 %v615, %v487
    %v680 = vadd.f32 %v616, %v488
    %v681 = vadd.f32 %v617, %v489
    %v682 = vadd.f32 %v618, %v490
    %v683 = vadd.f32 %v619, %v491
    %v684 = vadd.f32 %v620, %v492
    %v685 = vadd.f32 %v621, %v493
    %v686 = vadd.f32 %v622, %v494
    %v687 = vadd.f32 %v623, %v495
    %v688 = vadd.f32 %v624, %v496
    %v689 = vadd.f32 %v625, %v497
    %v690 = vadd.f32 %v626, %v498
    %v691 = vadd.f32 %v627, %v499
    %v692 = vadd.f32 %v628, %v500
    %v693 = vadd.f32 %v629, %v501
    %v694 = vmul.f32 %v243, %v243
    %v695 = vmul.f32 %v244, %v244
    %v696 = vmul.f32 %v245, %v245
    %v697 = vmul.f32 %v246, %v246
    %v698 = vmul.f32 %v247, %v247
    %v699 = vmul.f32 %v248, %v248
    %v700 = vmul.f32 %v249, %v249
    %v701 = vmul.f32 %v250, %v250
    %v702 = vmul.f32 %v251, %v251
    %v703 = vmul.f32 %v252, %v252
    %v704 = vmul.f32 %v253, %v253
    %v705 = vmul.f32 %v254, %v254
    %v706 = vmul.f32 %v255, %v255
    %v707 = vmul.f32 %v256, %v256
    %v708 = vmul.f32 %v257, %v257
    %v709 = vmul.f32 %v258, %v258
    %v710 = vmul.f32 %v259, %v259
    %v711 = vmul.f32 %v260, %v260
    %v712 = vmul.f32 %v261, %v261
    %v713 = vmul.f32 %v262, %v262
    %v714 = vmul.f32 %v263, %v263
    %v715 = vmul.f32 %v264, %v264
    %v716 = vmul.f32 %v265, %v265
    %v717 = vmul.f32 %v266, %v266
    %v718 = vmul.f32 %v267, %v267
    %v719 = vmul.f32 %v268, %v268
    %v720 = vmul.f32 %v269, %v269
    %v721 = vmul.f32 %v270, %v270
    %v722 = vmul.f32 %v271, %v271
    %v723 = vmul.f32 %v272, %v272
    %v724 = vmul.f32 %v273, %v273
    %v725 = vmul.f32 %v274, %v274
    %v726 = vmul.f32 %v275, %v275
    %v727 = vmul.f32 %v276, %v276
    %v728 = vmul.f32 %v277, %v277
    %v729 = vmul.f32 %v278, %v278
    %v730 = vmul.f32 %v279, %v279
    %v731 = vmul.f32 %v280, %v280
    %v732 = vmul.f32 %v281, %v281
    %v733 = vmul.f32 %v282, %v282
    %v734 = vmul.f32 %v283, %v283
    %v735 = vmul.f32 %v284, %v284
    %v736 = vmul.f32 %v285, %v285
    %v737 = vmul.f32 %v286, %v286
    %v738 = vmul.f32 %v287, %v287
    %v739 = vmul.f32 %v288, %v288
    %v740 = vmul.f32 %v289, %v289
    %v741 = vmul.f32 %v290, %v290
    %v742 = vmul.f32 %v291, %v291
    %v743 = vmul.f32 %v292, %v292
    %v744 = vmul.f32 %v293, %v293
    %v745 = vmul.f32 %v294, %v294
    %v746 = vmul.f32 %v295, %v295
    %v747 = vmul.f32 %v296, %v296
    %v748 = vmul.f32 %v297, %v297
    %v749 = vmul.f32 %v298, %v298
    %v750 = vmul.f32 %v299, %v299
    %v751 = vmul.f32 %v300, %v300
    %v752 = vmul.f32 %v301, %v301
    %v753 = vmul.f32 %v302, %v302
    %v754 = vmul.f32 %v303, %v303
    %v755 = vmul.f32 %v304, %v304
    %v756 = vmul.f32 %v305, %v305
    %v757 = vmul.f32 %v306, %v306
    %v758 = vmul.f32 %v308, %v308
    %v759 = vmul.f32 %v309, %v309
    %v760 = vmul.f32 %v310, %v310
    %v761 = vmul.f32 %v311, %v311
    %v762 = vmul.f32 %v312, %v312
    %v763 = vmul.f32 %v313, %v313
    %v764 = vmul.f32 %v314, %v314
    %v765 = vmul.f32 %v315, %v315
    %v766 = vmul.f32 %v316, %v316
    %v767 = vmul.f32 %v317, %v317
    %v768 = vmul.f32 %v318, %v318
    %v769 = vmul.f32 %v319, %v319
    %v770 = vmul.f32 %v320, %v320
    %v771 = vmul.f32 %v321, %v321
    %v772 = vmul.f32 %v322, %v322
    %v773 = vmul.f32 %v323, %v323
    %v774 = vmul.f32 %v324, %v324
    %v775 = vmul.f32 %v325, %v325
    %v776 = vmul.f32 %v326, %v326
    %v777 = vmul.f32 %v327, %v327
    %v778 = vmul.f32 %v328, %v328
    %v779 = vmul.f32 %v329, %v329
    %v780 = vmul.f32 %v330, %v330
    %v781 = vmul.f32 %v331, %v331
    %v782 = vmul.f32 %v332, %v332
    %v783 = vmul.f32 %v333, %v333
    %v784 = vmul.f32 %v334, %v334
    %v785 = vmul.f32 %v335, %v335
    %v786 = vmul.f32 %v336, %v336
    %v787 = vmul.f32 %v337, %v337
    %v788 = vmul.f32 %v338, %v338
    %v789 = vmul.f32 %v339, %v339
    %v790 = vmul.f32 %v340, %v340
    %v791 = vmul.f32 %v341, %v341
    %v792 = vmul.f32 %v342, %v342
    %v793 = vmul.f32 %v343, %v343
    %v794 = vmul.f32 %v344, %v344
    %v795 = vmul.f32 %v345, %v345
    %v796 = vmul.f32 %v346, %v346
    %v797 = vmul.f32 %v347, %v347
    %v798 = vmul.f32 %v348, %v348
    %v799 = vmul.f32 %v349, %v349
    %v800 = vmul.f32 %v350, %v350
    %v801 = vmul.f32 %v351, %v351
    %v802 = vmul.f32 %v352, %v352
    %v803 = vmul.f32 %v353, %v353
    %v804 = vmul.f32 %v354, %v354
    %v805 = vmul.f32 %v355, %v355
    %v806 = vmul.f32 %v356, %v356
    %v807 = vmul.f32 %v357, %v357
    %v808 = vmul.f32 %v358, %v358
    %v809 = vmul.f32 %v359, %v359
    %v810 = vmul.f32 %v360, %v360
    %v811 = vmul.f32 %v361, %v361
    %v812 = vmul.f32 %v362, %v362
    %v813 = vmul.f32 %v363, %v363
    %v814 = vmul.f32 %v364, %v364
    %v815 = vmul.f32 %v365, %v365
    %v816 = vmul.f32 %v366, %v366
    %v817 = vmul.f32 %v367, %v367
    %v818 = vmul.f32 %v368, %v368
    %v819 = vmul.f32 %v369, %v369
    %v820 = vmul.f32 %v370, %v370
    %v821 = vmul.f32 %v371, %v371
    %v822 = vadd.f32 %v694, %v758
    %v823 = vadd.f32 %v695, %v759
    %v824 = vadd.f32 %v696, %v760
    %v825 = vadd.f32 %v697, %v761
    %v826 = vadd.f32 %v698, %v762
    %v827 = vadd.f32 %v699, %v763
    %v828 = vadd.f32 %v700, %v764
    %v829 = vadd.f32 %v701, %v765
    %v830 = vadd.f32 %v702, %v766
    %v831 = vadd.f32 %v703, %v767
    %v832 = vadd.f32 %v704, %v768
    %v833 = vadd.f32 %v705, %v769
    %v834 = vadd.f32 %v706, %v770
    %v835 = vadd.f32 %v707, %v771
    %v836 = vadd.f32 %v708, %v772
    %v837 = vadd.f32 %v709, %v773
    %v838 = vadd.f32 %v710, %v774
    %v839 = vadd.f32 %v711, %v775
    %v840 = vadd.f32 %v712, %v776
    %v841 = vadd.f32 %v713, %v777
    %v842 = vadd.f32 %v714, %v778
    %v843 = vadd.f32 %v715, %v779
    %v844 = vadd.f32 %v716, %v780
    %v845 = vadd.f32 %v717, %v781
    %v846 = vadd.f32 %v718, %v782
    %v847 = vadd.f32 %v719, %v783
    %v848 = vadd.f32 %v720, %v784
    %v849 = vadd.f32 %v721, %v785
    %v850 = vadd.f32 %v722, %v786
    %v851 = vadd.f32 %v723, %v787
    %v852 = vadd.f32 %v724, %v788
    %v853 = vadd.f32 %v725, %v789
    %v854 = vadd.f32 %v726, %v790
    %v855 = vadd.f32 %v727, %v791
    %v856 = vadd.f32 %v728, %v792
    %v857 = vadd.f32 %v729, %v793
    %v858 = vadd.f32 %v730, %v794
    %v859 = vadd.f32 %v731, %v795
    %v860 = vadd.f32 %v732, %v796
    %v861 = vadd.f32 %v733, %v797
    %v862 = vadd.f32 %v734, %v798
    %v863 = vadd.f32 %v735, %v799
    %v864 = vadd.f32 %v736, %v800
    %v865 = vadd.f32 %v737, %v801
    %v866 = vadd.f32 %v738, %v802
    %v867 = vadd.f32 %v739, %v803
    %v868 = vadd.f32 %v740, %v804
    %v869 = vadd.f32 %v741, %v805
    %v870 = vadd.f32 %v742, %v806
    %v871 = vadd.f32 %v743, %v807
    %v872 = vadd.f32 %v744, %v808
    %v873 = vadd.f32 %v745, %v809
    %v874 = vadd.f32 %v746, %v810
    %v875 = vadd.f32 %v747, %v811
    %v876 = vadd.f32 %v748, %v812
    %v877 = vadd.f32 %v749, %v813
    %v878 = vadd.f32 %v750, %v814
    %v879 = vadd.f32 %v751, %v815
    %v880 = vadd.f32 %v752, %v816
    %v881 = vadd.f32 %v753, %v817
    %v882 = vadd.f32 %v754, %v818
    %v883 = vadd.f32 %v755, %v819
    %v884 = vadd.f32 %v756, %v820
    %v885 = vadd.f32 %v757, %v821
    %v886 = vmul.f32 %v373, %v373
    %v887 = vmul.f32 %v374, %v374
    %v888 = vmul.f32 %v375, %v375
    %v889 = vmul.f32 %v376, %v376
    %v890 = vmul.f32 %v377, %v377
    %v891 = vmul.f32 %v378, %v378
    %v892 = vmul.f32 %v379, %v379
    %v893 = vmul.f32 %v380, %v380
    %v894 = vmul.f32 %v381, %v381
    %v895 = vmul.f32 %v382, %v382
    %v896 = vmul.f32 %v383, %v383
    %v897 = vmul.f32 %v384, %v384
    %v898 = vmul.f32 %v385, %v385
    %v899 = vmul.f32 %v386, %v386
    %v900 = vmul.f32 %v387, %v387
    %v901 = vmul.f32 %v388, %v388
    %v902 = vmul.f32 %v389, %v389
    %v903 = vmul.f32 %v390, %v390
    %v904 = vmul.f32 %v391, %v391
    %v905 = vmul.f32 %v392, %v392
    %v906 = vmul.f32 %v393, %v393
    %v907 = vmul.f32 %v394, %v394
    %v908 = vmul.f32 %v395, %v395
    %v909 = vmul.f32 %v396, %v396
    %v910 = vmul.f32 %v397, %v397
    %v911 = vmul.f32 %v398, %v398
    %v912 = vmul.f32 %v399, %v399
    %v913 = vmul.f32 %v400, %v400
    %v914 = vmul.f32 %v401, %v401
    %v915 = vmul.f32 %v402, %v402
    %v916 = vmul.f32 %v403, %v403
    %v917 = vmul.f32 %v404, %v404
    %v918 = vmul.f32 %v405, %v405
    %v919 = vmul.f32 %v406, %v406
    %v920 = vmul.f32 %v407, %v407
    %v921 = vmul.f32 %v408, %v408
    %v922 = vmul.f32 %v409, %v409
    %v923 = vmul.f32 %v410, %v410
    %v924 = vmul.f32 %v411, %v411
    %v925 = vmul.f32 %v412, %v412
    %v926 = vmul.f32 %v413, %v413
    %v927 = vmul.f32 %v414, %v414
    %v928 = vmul.f32 %v415, %v415
    %v929 = vmul.f32 %v416, %v416
    %v930 = vmul.f32 %v417, %v417
    %v931 = vmul.f32 %v418, %v418
    %v932 = vmul.f32 %v419, %v419
    %v933 = vmul.f32 %v420, %v420
    %v934 = vmul.f32 %v421, %v421
    %v935 = vmul.f32 %v422, %v422
    %v936 = vmul.f32 %v423, %v423
    %v937 = vmul.f32 %v424, %v424
    %v938 = vmul.f32 %v425, %v425
    %v939 = vmul.f32 %v426, %v426
    %v940 = vmul.f32 %v427, %v427
    %v941 = vmul.f32 %v428, %v428
    %v942 = vmul.f32 %v429, %v429
    %v943 = vmul.f32 %v430, %v430
    %v944 = vmul.f32 %v431, %v431
    %v945 = vmul.f32 %v432, %v432
    %v946 = vmul.f32 %v433, %v433
    %v947 = vmul.f32 %v434, %v434
    %v948 = vmul.f32 %v435, %v435
    %v949 = vmul.f32 %v436, %v436
    %v950 = vadd.f32 %v822, %v886
    %v951 = vadd.f32 %v823, %v887
    %v952 = vadd.f32 %v824, %v888
    %v953 = vadd.f32 %v825, %v889
    %v954 = vadd.f32 %v826, %v890
    %v955 = vadd.f32 %v827, %v891
    %v956 = vadd.f32 %v828, %v892
    %v957 = vadd.f32 %v829, %v893
    %v958 = vadd.f32 %v830, %v894
    %v959 = vadd.f32 %v831, %v895
    %v960 = vadd.f32 %v832, %v896
    %v961 = vadd.f32 %v833, %v897
    %v962 = vadd.f32 %v834, %v898
    %v963 = vadd.f32 %v835, %v899
    %v964 = vadd.f32 %v836, %v900
    %v965 = vadd.f32 %v837, %v901
    %v966 = vadd.f32 %v838, %v902
    %v967 = vadd.f32 %v839, %v903
    %v968 = vadd.f32 %v840, %v904
    %v969 = vadd.f32 %v841, %v905
    %v970 = vadd.f32 %v842, %v906
    %v971 = vadd.f32 %v843, %v907
    %v972 = vadd.f32 %v844, %v908
    %v973 = vadd.f32 %v845, %v909
    %v974 = vadd.f32 %v846, %v910
    %v975 = vadd.f32 %v847, %v911
    %v976 = vadd.f32 %v848, %v912
    %v977 = vadd.f32 %v849, %v913
    %v978 = vadd.f32 %v850, %v914
    %v979 = vadd.f32 %v851, %v915
    %v980 = vadd.f32 %v852, %v916
    %v981 = vadd.f32 %v853, %v917
    %v982 = vadd.f32 %v854, %v918
    %v983 = vadd.f32 %v855, %v919
    %v984 = vadd.f32 %v856, %v920
    %v985 = vadd.f32 %v857, %v921
    %v986 = vadd.f32 %v858, %v922
    %v987 = vadd.f32 %v859, %v923
    %v988 = vadd.f32 %v860, %v924
    %v989 = vadd.f32 %v861, %v925
    %v990 = vadd.f32 %v862, %v926
    %v991 = vadd.f32 %v863, %v927
    %v992 = vadd.f32 %v864, %v928
    %v993 = vadd.f32 %v865, %v929
    %v994 = vadd.f32 %v866, %v930
    %v995 = vadd.f32 %v867, %v931
    %v996 = vadd.f32 %v868, %v932
    %v997 = vadd.f32 %v869, %v933
    %v998 = vadd.f32 %v870, %v934
    %v999 = vadd.f32 %v871, %v935
    %v1000 = vadd.f32 %v872, %v936
    %v1001 = vadd.f32 %v873, %v937
    %v1002 = vadd.f32 %v874, %v938
    %v1003 = vadd.f32 %v875, %v939
    %v1004 = vadd.f32 %v876, %v940
    %v1005 = vadd.f32 %v877, %v941
    %v1006 = vadd.f32 %v878, %v942
    %v1007 = vadd.f32 %v879, %v943
    %v1008 = vadd.f32 %v880, %v944
    %v1009 = vadd.f32 %v881, %v945
    %v1010 = vadd.f32 %v882, %v946
    %v1011 = vadd.f32 %v883, %v947
    %v1012 = vadd.f32 %v884, %v948
    %v1013 = vadd.f32 %v885, %v949
    %v1014 = vmul.f32 %v438, %v438
    %v1015 = vmul.f32 %v439, %v439
    %v1016 = vmul.f32 %v440, %v440
    %v1017 = vmul.f32 %v441, %v441
    %v1018 = vmul.f32 %v442, %v442
    %v1019 = vmul.f32 %v443, %v443
    %v1020 = vmul.f32 %v444, %v444
    %v1021 = vmul.f32 %v445, %v445
    %v1022 = vmul.f32 %v446, %v446
    %v1023 = vmul.f32 %v447, %v447
    %v1024 = vmul.f32 %v448, %v448
    %v1025 = vmul.f32 %v449, %v449
    %v1026 = vmul.f32 %v450, %v450
    %v1027 = vmul.f32 %v451, %v451
    %v1028 = vmul.f32 %v452, %v452
    %v1029 = vmul.f32 %v453, %v453
    %v1030 = vmul.f32 %v454, %v454
    %v1031 = vmul.f32 %v455, %v455
    %v1032 = vmul.f32 %v456, %v456
    %v1033 = vmul.f32 %v457, %v457
    %v1034 = vmul.f32 %v458, %v458
    %v1035 = vmul.f32 %v459, %v459
    %v1036 = vmul.f32 %v460, %v460
    %v1037 = vmul.f32 %v461, %v461
    %v1038 = vmul.f32 %v462, %v462
    %v1039 = vmul.f32 %v463, %v463
    %v1040 = vmul.f32 %v464, %v464
    %v1041 = vmul.f32 %v465, %v465
    %v1042 = vmul.f32 %v466, %v466
    %v1043 = vmul.f32 %v467, %v467
    %v1044 = vmul.f32 %v468, %v468
    %v1045 = vmul.f32 %v469, %v469
    %v1046 = vmul.f32 %v470, %v470
    %v1047 = vmul.f32 %v471, %v471
    %v1048 = vmul.f32 %v472, %v472
    %v1049 = vmul.f32 %v473, %v473
    %v1050 = vmul.f32 %v474, %v474
    %v1051 = vmul.f32 %v475, %v475
    %v1052 = vmul.f32 %v476, %v476
    %v1053 = vmul.f32 %v477, %v477
    %v1054 = vmul.f32 %v478, %v478
    %v1055 = vmul.f32 %v479, %v479
    %v1056 = vmul.f32 %v480, %v480
    %v1057 = vmul.f32 %v481, %v481
    %v1058 = vmul.f32 %v482, %v482
    %v1059 = vmul.f32 %v483, %v483
    %v1060 = vmul.f32 %v484, %v484
    %v1061 = vmul.f32 %v485, %v485
    %v1062 = vmul.f32 %v486, %v486
    %v1063 = vmul.f32 %v487, %v487
    %v1064 = vmul.f32 %v488, %v488
    %v1065 = vmul.f32 %v489, %v489
    %v1066 = vmul.f32 %v490, %v490
    %v1067 = vmul.f32 %v491, %v491
    %v1068 = vmul.f32 %v492, %v492
    %v1069 = vmul.f32 %v493, %v493
    %v1070 = vmul.f32 %v494, %v494
    %v1071 = vmul.f32 %v495, %v495
    %v1072 = vmul.f32 %v496, %v496
    %v1073 = vmul.f32 %v497, %v497
    %v1074 = vmul.f32 %v498, %v498
    %v1075 = vmul.f32 %v499, %v499
    %v1076 = vmul.f32 %v500, %v500
    %v1077 = vmul.f32 %v501, %v501
    %v1078 = vadd.f32 %v950, %v1014
    %v1079 = vadd.f32 %v951, %v1015
    %v1080 = vadd.f32 %v952, %v1016
    %v1081 = vadd.f32 %v953, %v1017
    %v1082 = vadd.f32 %v954, %v1018
    %v1083 = vadd.f32 %v955, %v1019
    %v1084 = vadd.f32 %v956, %v1020
    %v1085 = vadd.f32 %v957, %v1021
    %v1086 = vadd.f32 %v958, %v1022
    %v1087 = vadd.f32 %v959, %v1023
    %v1088 = vadd.f32 %v960, %v1024
    %v1089 = vadd.f32 %v961, %v1025
    %v1090 = vadd.f32 %v962, %v1026
    %v1091 = vadd.f32 %v963, %v1027
    %v1092 = vadd.f32 %v964, %v1028
    %v1093 = vadd.f32 %v965, %v1029
    %v1094 = vadd.f32 %v966, %v1030
    %v1095 = vadd.f32 %v967, %v1031
    %v1096 = vadd.f32 %v968, %v1032
    %v1097 = vadd.f32 %v969, %v1033
    %v1098 = vadd.f32 %v970, %v1034
    %v1099 = vadd.f32 %v971, %v1035
    %v1100 = vadd.f32 %v972, %v1036
    %v1101 = vadd.f32 %v973, %v1037
    %v1102 = vadd.f32 %v974, %v1038
    %v1103 = vadd.f32 %v975, %v1039
    %v1104 = vadd.f32 %v976, %v1040
    %v1105 = vadd.f32 %v977, %v1041
    %v1106 = vadd.f32 %v978, %v1042
    %v1107 = vadd.f32 %v979, %v1043
    %v1108 = vadd.f32 %v980, %v1044
    %v1109 = vadd.f32 %v981, %v1045
    %v1110 = vadd.f32 %v982, %v1046
    %v1111 = vadd.f32 %v983, %v1047
    %v1112 = vadd.f32 %v984, %v1048
    %v1113 = vadd.f32 %v985, %v1049
    %v1114 = vadd.f32 %v986, %v1050
    %v1115 = vadd.f32 %v987, %v1051
    %v1116 = vadd.f32 %v988, %v1052
    %v1117 = vadd.f32 %v989, %v1053
    %v1118 = vadd.f32 %v990, %v1054
    %v1119 = vadd.f32 %v991, %v1055
    %v1120 = vadd.f32 %v992, %v1056
    %v1121 = vadd.f32 %v993, %v1057
    %v1122 = vadd.f32 %v994, %v1058
    %v1123 = vadd.f32 %v995, %v1059
    %v1124 = vadd.f32 %v996, %v1060
    %v1125 = vadd.f32 %v997, %v1061
    %v1126 = vadd.f32 %v998, %v1062
    %v1127 = vadd.f32 %v999, %v1063
    %v1128 = vadd.f32 %v1000, %v1064
    %v1129 = vadd.f32 %v1001, %v1065
    %v1130 = vadd.f32 %v1002, %v1066
    %v1131 = vadd.f32 %v1003, %v1067
    %v1132 = vadd.f32 %v1004, %v1068
    %v1133 = vadd.f32 %v1005, %v1069
    %v1134 = vadd.f32 %v1006, %v1070
    %v1135 = vadd.f32 %v1007, %v1071
    %v1136 = vadd.f32 %v1008, %v1072
    %v1137 = vadd.f32 %v1009, %v1073
    %v1138 = vadd.f32 %v1010, %v1074
    %v1139 = vadd.f32 %v1011, %v1075
    %v1140 = vadd.f32 %v1012, %v1076
    %v1141 = vadd.f32 %v1013, %v1077
    %v1142 = vsel %vm179, %v630, 0.0
    %v1143 = vsel %vm180, %v631, 0.0
    %v1144 = vsel %vm181, %v632, 0.0
    %v1145 = vsel %vm182, %v633, 0.0
    %v1146 = vsel %vm183, %v634, 0.0
    %v1147 = vsel %vm184, %v635, 0.0
    %v1148 = vsel %vm185, %v636, 0.0
    %v1149 = vsel %vm186, %v637, 0.0
    %v1150 = vsel %vm187, %v638, 0.0
    %v1151 = vsel %vm188, %v639, 0.0
    %v1152 = vsel %vm189, %v640, 0.0
    %v1153 = vsel %vm190, %v641, 0.0
    %v1154 = vsel %vm191, %v642, 0.0
    %v1155 = vsel %vm192, %v643, 0.0
    %v1156 = vsel %vm193, %v644, 0.0
    %v1157 = vsel %vm194, %v645, 0.0
    %v1158 = vsel %vm195, %v646, 0.0
    %v1159 = vsel %vm196, %v647, 0.0
    %v1160 = vsel %vm197, %v648, 0.0
    %v1161 = vsel %vm198, %v649, 0.0
    %v1162 = vsel %vm199, %v650, 0.0
    %v1163 = vsel %vm200, %v651, 0.0
    %v1164 = vsel %vm201, %v652, 0.0
    %v1165 = vsel %vm202, %v653, 0.0
    %v1166 = vsel %vm203, %v654, 0.0
    %v1167 = vsel %vm204, %v655, 0.0
    %v1168 = vsel %vm205, %v656, 0.0
    %v1169 = vsel %vm206, %v657, 0.0
    %v1170 = vsel %vm207, %v658, 0.0
    %v1171 = vsel %vm208, %v659, 0.0
    %v1172 = vsel %vm209, %v660, 0.0
    %v1173 = vsel %vm210, %v661, 0.0
    %v1174 = vsel %vm211, %v662, 0.0
    %v1175 = vsel %vm212, %v663, 0.0
    %v1176 = vsel %vm213, %v664, 0.0
    %v1177 = vsel %vm214, %v665, 0.0
    %v1178 = vsel %vm215, %v666, 0.0
    %v1179 = vsel %vm216, %v667, 0.0
    %v1180 = vsel %vm217, %v668, 0.0
    %v1181 = vsel %vm218, %v669, 0.0
    %v1182 = vsel %vm219, %v670, 0.0
    %v1183 = vsel %vm220, %v671, 0.0
    %v1184 = vsel %vm221, %v672, 0.0
    %v1185 = vsel %vm222, %v673, 0.0
    %v1186 = vsel %vm223, %v674, 0.0
    %v1187 = vsel %vm224, %v675, 0.0
    %v1188 = vsel %vm225, %v676, 0.0
    %v1189 = vsel %vm226, %v677, 0.0
    %v1190 = vsel %vm227, %v678, 0.0
    %v1191 = vsel %vm228, %v679, 0.0
    %v1192 = vsel %vm229, %v680, 0.0
    %v1193 = vsel %vm230, %v681, 0.0
    %v1194 = vsel %vm231, %v682, 0.0
    %v1195 = vsel %vm232, %v683, 0.0
    %v1196 = vsel %vm233, %v684, 0.0
    %v1197 = vsel %vm234, %v685, 0.0
    %v1198 = vsel %vm235, %v686, 0.0
    %v1199 = vsel %vm236, %v687, 0.0
    %v1200 = vsel %vm237, %v688, 0.0
    %v1201 = vsel %vm238, %v689, 0.0
    %v1202 = vsel %vm239, %v690, 0.0
    %v1203 = vsel %vm240, %v691, 0.0
    %v1204 = vsel %vm241, %v692, 0.0
    %v1205 = vsel %vm242, %v693, 0.0
    %v1206 = vsel %vm179, %v1078, 0.0
    %v1207 = vsel %vm180, %v1079, 0.0
    %v1208 = vsel %vm181, %v1080, 0.0
    %v1209 = vsel %vm182, %v1081, 0.0
    %v1210 = vsel %vm183, %v1082, 0.0
    %v1211 = vsel %vm184, %v1083, 0.0
    %v1212 = vsel %vm185, %v1084, 0.0
    %v1213 = vsel %vm186, %v1085, 0.0
    %v1214 = vsel %vm187, %v1086, 0.0
    %v1215 = vsel %vm188, %v1087, 0.0
    %v1216 = vsel %vm189, %v1088, 0.0
    %v1217 = vsel %vm190, %v1089, 0.0
    %v1218 = vsel %vm191, %v1090, 0.0
    %v1219 = vsel %vm192, %v1091, 0.0
    %v1220 = vsel %vm193, %v1092, 0.0
    %v1221 = vsel %vm194, %v1093, 0.0
    %v1222 = vsel %vm195, %v1094, 0.0
    %v1223 = vsel %vm196, %v1095, 0.0
    %v1224 = vsel %vm197, %v1096, 0.0
    %v1225 = vsel %vm198, %v1097, 0.0
    %v1226 = vsel %vm199, %v1098, 0.0
    %v1227 = vsel %vm200, %v1099, 0.0
    %v1228 = vsel %vm201, %v1100, 0.0
    %v1229 = vsel %vm202, %v1101, 0.0
    %v1230 = vsel %vm203, %v1102, 0.0
    %v1231 = vsel %vm204, %v1103, 0.0
    %v1232 = vsel %vm205, %v1104, 0.0
    %v1233 = vsel %vm206, %v1105, 0.0
    %v1234 = vsel %vm207, %v1106, 0.0
    %v1235 = vsel %vm208, %v1107, 0.0
    %v1236 = vsel %vm209, %v1108, 0.0
    %v1237 = vsel %vm210, %v1109, 0.0
    %v1238 = vsel %vm211, %v1110, 0.0
    %v1239 = vsel %vm212, %v1111, 0.0
    %v1240 = vsel %vm213, %v1112, 0.0
    %v1241 = vsel %vm214, %v1113, 0.0
    %v1242 = vsel %vm215, %v1114, 0.0
    %v1243 = vsel %vm216, %v1115, 0.0
    %v1244 = vsel %vm217, %v1116, 0.0
    %v1245 = vsel %vm218, %v1117, 0.0
    %v1246 = vsel %vm219, %v1118, 0.0
    %v1247 = vsel %vm220, %v1119, 0.0
    %v1248 = vsel %vm221, %v1120, 0.0
    %v1249 = vsel %vm222, %v1121, 0.0
    %v1250 = vsel %vm223, %v1122, 0.0
    %v1251 = vsel %vm224, %v1123, 0.0
    %v1252 = vsel %vm225, %v1124, 0.0
    %v1253 = vsel %vm226, %v1125, 0.0
    %v1254 = vsel %vm227, %v1126, 0.0
    %v1255 = vsel %vm228, %v1127, 0.0
    %v1256 = vsel %vm229, %v1128, 0.0
    %v1257 = vsel %vm230, %v1129, 0.0
    %v1258 = vsel %vm231, %v1130, 0.0
    %v1259 = vsel %vm232, %v1131, 0.0
    %v1260 = vsel %vm233, %v1132, 0.0
    %v1261 = vsel %vm234, %v1133, 0.0
    %v1262 = vsel %vm235, %v1134, 0.0
    %v1263 = vsel %vm236, %v1135, 0.0
    %v1264 = vsel %vm237, %v1136, 0.0
    %v1265 = vsel %vm238, %v1137, 0.0
    %v1266 = vsel %vm239, %v1138, 0.0
    %v1267 = vsel %vm240, %v1139, 0.0
    %v1268 = vsel %vm241, %v1140, 0.0
    %v1269 = vsel %vm242, %v1141, 0.0
    %v1270 = vld [vmem:[#allocation2] sm:$0x1]
    %vm1271 = vcmask 211968
    %v1272 = vsel %vm1271, %v1142, 0.0
    %v1273 = vsel %vm1271, %v1143, 0.0
    %v1274 = vadd.f32 %v1272, %v1273
    %v1275 = vsel %vm1271, %v1144, 0.0
    %v1276 = vadd.f32 %v1274, %v1275
    %v1277 = vsel %vm1271, %v1145, 0.0
    %v1278 = vadd.f32 %v1276, %v1277
    %v1279 = vsel %vm1271, %v1146, 0.0
    %v1280 = vadd.f32 %v1278, %v1279
    %v1281 = vsel %vm1271, %v1147, 0.0
    %v1282 = vadd.f32 %v1280, %v1281
    %v1283 = vsel %vm1271, %v1148, 0.0
    %v1284 = vadd.f32 %v1282, %v1283
    %v1285 = vsel %vm1271, %v1149, 0.0
    %v1286 = vadd.f32 %v1284, %v1285
    %v1287 = vsel %vm1271, %v1150, 0.0
    %v1288 = vadd.f32 %v1286, %v1287
    %v1289 = vsel %vm1271, %v1151, 0.0
    %v1290 = vadd.f32 %v1288, %v1289
    %v1291 = vsel %vm1271, %v1152, 0.0
    %v1292 = vadd.f32 %v1290, %v1291
    %v1293 = vsel %vm1271, %v1153, 0.0
    %v1294 = vadd.f32 %v1292, %v1293
    %v1295 = vsel %vm1271, %v1154, 0.0
    %v1296 = vadd.f32 %v1294, %v1295
    %v1297 = vsel %vm1271, %v1155, 0.0
    %v1298 = vadd.f32 %v1296, %v1297
    %v1299 = vsel %vm1271, %v1156, 0.0
    %v1300 = vadd.f32 %v1298, %v1299
    %v1301 = vsel %vm1271, %v1157, 0.0
    %v1302 = vadd.f32 %v1300, %v1301
    %v1303 = vsel %vm1271, %v1158, 0.0
    %v1304 = vadd.f32 %v1302, %v1303
    %v1305 = vsel %vm1271, %v1159, 0.0
    %v1306 = vadd.f32 %v1304, %v1305
    %v1307 = vsel %vm1271, %v1160, 0.0
    %v1308 = vadd.f32 %v1306, %v1307
    %v1309 = vsel %vm1271, %v1161, 0.0
    %v1310 = vadd.f32 %v1308, %v1309
    %v1311 = vsel %vm1271, %v1162, 0.0
    %v1312 = vadd.f32 %v1310, %v1311
    %v1313 = vsel %vm1271, %v1163, 0.0
    %v1314 = vadd.f32 %v1312, %v1313
    %v1315 = vsel %vm1271, %v1164, 0.0
    %v1316 = vadd.f32 %v1314, %v1315
    %v1317 = vsel %vm1271, %v1165, 0.0
    %v1318 = vadd.f32 %v1316, %v1317
    %v1319 = vsel %vm1271, %v1166, 0.0
    %v1320 = vadd.f32 %v1318, %v1319
    %v1321 = vsel %vm1271, %v1167, 0.0
    %v1322 = vadd.f32 %v1320, %v1321
    %v1323 = vsel %vm1271, %v1168, 0.0
    %v1324 = vadd.f32 %v1322, %v1323
    %v1325 = vsel %vm1271, %v1169, 0.0
    %v1326 = vadd.f32 %v1324, %v1325
    %v1327 = vsel %vm1271, %v1170, 0.0
    %v1328 = vadd.f32 %v1326, %v1327
    %v1329 = vsel %vm1271, %v1171, 0.0
    %v1330 = vadd.f32 %v1328, %v1329
    %v1331 = vsel %vm1271, %v1172, 0.0
    %v1332 = vadd.f32 %v1330, %v1331
    %v1333 = vsel %vm1271, %v1173, 0.0
    %v1334 = vadd.f32 %v1332, %v1333
    %v1335 = vsel %vm1271, %v1174, 0.0
    %v1336 = vadd.f32 %v1334, %v1335
    %v1337 = vsel %vm1271, %v1175, 0.0
    %v1338 = vadd.f32 %v1336, %v1337
    %v1339 = vsel %vm1271, %v1176, 0.0
    %v1340 = vadd.f32 %v1338, %v1339
    %v1341 = vsel %vm1271, %v1177, 0.0
    %v1342 = vadd.f32 %v1340, %v1341
    %v1343 = vsel %vm1271, %v1178, 0.0
    %v1344 = vadd.f32 %v1342, %v1343
    %v1345 = vsel %vm1271, %v1179, 0.0
    %v1346 = vadd.f32 %v1344, %v1345
    %v1347 = vsel %vm1271, %v1180, 0.0
    %v1348 = vadd.f32 %v1346, %v1347
    %v1349 = vsel %vm1271, %v1181, 0.0
    %v1350 = vadd.f32 %v1348, %v1349
    %v1351 = vsel %vm1271, %v1182, 0.0
    %v1352 = vadd.f32 %v1350, %v1351
    %v1353 = vsel %vm1271, %v1183, 0.0
    %v1354 = vadd.f32 %v1352, %v1353
    %v1355 = vsel %vm1271, %v1184, 0.0
    %v1356 = vadd.f32 %v1354, %v1355
    %v1357 = vsel %vm1271, %v1185, 0.0
    %v1358 = vadd.f32 %v1356, %v1357
    %v1359 = vsel %vm1271, %v1186, 0.0
    %v1360 = vadd.f32 %v1358, %v1359
    %v1361 = vsel %vm1271, %v1187, 0.0
    %v1362 = vadd.f32 %v1360, %v1361
    %v1363 = vsel %vm1271, %v1188, 0.0
    %v1364 = vadd.f32 %v1362, %v1363
    %v1365 = vsel %vm1271, %v1189, 0.0
    %v1366 = vadd.f32 %v1364, %v1365
    %v1367 = vsel %vm1271, %v1190, 0.0
    %v1368 = vadd.f32 %v1366, %v1367
    %v1369 = vsel %vm1271, %v1191, 0.0
    %v1370 = vadd.f32 %v1368, %v1369
    %v1371 = vsel %vm1271, %v1192, 0.0
    %v1372 = vadd.f32 %v1370, %v1371
    %v1373 = vsel %vm1271, %v1193, 0.0
    %v1374 = vadd.f32 %v1372, %v1373
    %v1375 = vsel %vm1271, %v1194, 0.0
    %v1376 = vadd.f32 %v1374, %v1375
    %v1377 = vsel %vm1271, %v1195, 0.0
    %v1378 = vadd.f32 %v1376, %v1377
    %v1379 = vsel %vm1271, %v1196, 0.0
    %v1380 = vadd.f32 %v1378, %v1379
    %v1381 = vsel %vm1271, %v1197, 0.0
    %v1382 = vadd.f32 %v1380, %v1381
    %v1383 = vsel %vm1271, %v1198, 0.0
    %v1384 = vadd.f32 %v1382, %v1383
    %v1385 = vsel %vm1271, %v1199, 0.0
    %v1386 = vadd.f32 %v1384, %v1385
    %v1387 = vsel %vm1271, %v1200, 0.0
    %v1388 = vadd.f32 %v1386, %v1387
    %v1389 = vsel %vm1271, %v1201, 0.0
    %v1390 = vadd.f32 %v1388, %v1389
    %v1391 = vsel %vm1271, %v1202, 0.0
    %v1392 = vadd.f32 %v1390, %v1391
    %v1393 = vsel %vm1271, %v1203, 0.0
    %v1394 = vadd.f32 %v1392, %v1393
    %v1395 = vsel %vm1271, %v1204, 0.0
    %v1396 = vadd.f32 %v1394, %v1395
    %v1397 = vsel %vm1271, %v1205, 0.0
    %v1398 = vadd.f32 %v1396, %v1397
    %v1399 = vrot.slane %v1398, 4
    %v1400 = vadd.f32 %v1398, %v1399
    %v1401 = vrot.slane %v1400, 2
    %v1402 = vadd.f32 %v1400, %v1401
    %v1403 = vrot.slane %v1402, 1
    %v1404 = vadd.f32 %v1402, %v1403
    %v1405 = vadd.f32 %v1270, %v1404
    %vm1406 = vcmask 204800
    %1407 = vst.msk [vmem:[#allocation2] sm:$0x1] %vm1406, %v1405
    %v1408 = vld [vmem:[#allocation2 + $0x1] sm:$0x1]
    %v1409 = vsel %vm1271, %v1206, 0.0
    %v1410 = vsel %vm1271, %v1207, 0.0
    %v1411 = vadd.f32 %v1409, %v1410
    %v1412 = vsel %vm1271, %v1208, 0.0
    %v1413 = vadd.f32 %v1411, %v1412
    %v1414 = vsel %vm1271, %v1209, 0.0
    %v1415 = vadd.f32 %v1413, %v1414
    %v1416 = vsel %vm1271, %v1210, 0.0
    %v1417 = vadd.f32 %v1415, %v1416
    %v1418 = vsel %vm1271, %v1211, 0.0
    %v1419 = vadd.f32 %v1417, %v1418
    %v1420 = vsel %vm1271, %v1212, 0.0
    %v1421 = vadd.f32 %v1419, %v1420
    %v1422 = vsel %vm1271, %v1213, 0.0
    %v1423 = vadd.f32 %v1421, %v1422
    %v1424 = vsel %vm1271, %v1214, 0.0
    %v1425 = vadd.f32 %v1423, %v1424
    %v1426 = vsel %vm1271, %v1215, 0.0
    %v1427 = vadd.f32 %v1425, %v1426
    %v1428 = vsel %vm1271, %v1216, 0.0
    %v1429 = vadd.f32 %v1427, %v1428
    %v1430 = vsel %vm1271, %v1217, 0.0
    %v1431 = vadd.f32 %v1429, %v1430
    %v1432 = vsel %vm1271, %v1218, 0.0
    %v1433 = vadd.f32 %v1431, %v1432
    %v1434 = vsel %vm1271, %v1219, 0.0
    %v1435 = vadd.f32 %v1433, %v1434
    %v1436 = vsel %vm1271, %v1220, 0.0
    %v1437 = vadd.f32 %v1435, %v1436
    %v1438 = vsel %vm1271, %v1221, 0.0
    %v1439 = vadd.f32 %v1437, %v1438
    %v1440 = vsel %vm1271, %v1222, 0.0
    %v1441 = vadd.f32 %v1439, %v1440
    %v1442 = vsel %vm1271, %v1223, 0.0
    %v1443 = vadd.f32 %v1441, %v1442
    %v1444 = vsel %vm1271, %v1224, 0.0
    %v1445 = vadd.f32 %v1443, %v1444
    %v1446 = vsel %vm1271, %v1225, 0.0
    %v1447 = vadd.f32 %v1445, %v1446
    %v1448 = vsel %vm1271, %v1226, 0.0
    %v1449 = vadd.f32 %v1447, %v1448
    %v1450 = vsel %vm1271, %v1227, 0.0
    %v1451 = vadd.f32 %v1449, %v1450
    %v1452 = vsel %vm1271, %v1228, 0.0
    %v1453 = vadd.f32 %v1451, %v1452
    %v1454 = vsel %vm1271, %v1229, 0.0
    %v1455 = vadd.f32 %v1453, %v1454
    %v1456 = vsel %vm1271, %v1230, 0.0
    %v1457 = vadd.f32 %v1455, %v1456
    %v1458 = vsel %vm1271, %v1231, 0.0
    %v1459 = vadd.f32 %v1457, %v1458
    %v1460 = vsel %vm1271, %v1232, 0.0
    %v1461 = vadd.f32 %v1459, %v1460
    %v1462 = vsel %vm1271, %v1233, 0.0
    %v1463 = vadd.f32 %v1461, %v1462
    %v1464 = vsel %vm1271, %v1234, 0.0
    %v1465 = vadd.f32 %v1463, %v1464
    %v1466 = vsel %vm1271, %v1235, 0.0
    %v1467 = vadd.f32 %v1465, %v1466
    %v1468 = vsel %vm1271, %v1236, 0.0
    %v1469 = vadd.f32 %v1467, %v1468
    %v1470 = vsel %vm1271, %v1237, 0.0
    %v1471 = vadd.f32 %v1469, %v1470
    %v1472 = vsel %vm1271, %v1238, 0.0
    %v1473 = vadd.f32 %v1471, %v1472
    %v1474 = vsel %vm1271, %v1239, 0.0
    %v1475 = vadd.f32 %v1473, %v1474
    %v1476 = vsel %vm1271, %v1240, 0.0
    %v1477 = vadd.f32 %v1475, %v1476
    %v1478 = vsel %vm1271, %v1241, 0.0
    %v1479 = vadd.f32 %v1477, %v1478
    %v1480 = vsel %vm1271, %v1242, 0.0
    %v1481 = vadd.f32 %v1479, %v1480
    %v1482 = vsel %vm1271, %v1243, 0.0
    %v1483 = vadd.f32 %v1481, %v1482
    %v1484 = vsel %vm1271, %v1244, 0.0
    %v1485 = vadd.f32 %v1483, %v1484
    %v1486 = vsel %vm1271, %v1245, 0.0
    %v1487 = vadd.f32 %v1485, %v1486
    %v1488 = vsel %vm1271, %v1246, 0.0
    %v1489 = vadd.f32 %v1487, %v1488
    %v1490 = vsel %vm1271, %v1247, 0.0
    %v1491 = vadd.f32 %v1489, %v1490
    %v1492 = vsel %vm1271, %v1248, 0.0
    %v1493 = vadd.f32 %v1491, %v1492
    %v1494 = vsel %vm1271, %v1249, 0.0
    %v1495 = vadd.f32 %v1493, %v1494
    %v1496 = vsel %vm1271, %v1250, 0.0
    %v1497 = vadd.f32 %v1495, %v1496
    %v1498 = vsel %vm1271, %v1251, 0.0
    %v1499 = vadd.f32 %v1497, %v1498
    %v1500 = vsel %vm1271, %v1252, 0.0
    %v1501 = vadd.f32 %v1499, %v1500
    %v1502 = vsel %vm1271, %v1253, 0.0
    %v1503 = vadd.f32 %v1501, %v1502
    %v1504 = vsel %vm1271, %v1254, 0.0
    %v1505 = vadd.f32 %v1503, %v1504
    %v1506 = vsel %vm1271, %v1255, 0.0
    %v1507 = vadd.f32 %v1505, %v1506
    %v1508 = vsel %vm1271, %v1256, 0.0
    %v1509 = vadd.f32 %v1507, %v1508
    %v1510 = vsel %vm1271, %v1257, 0.0
    %v1511 = vadd.f32 %v1509, %v1510
    %v1512 = vsel %vm1271, %v1258, 0.0
    %v1513 = vadd.f32 %v1511, %v1512
    %v1514 = vsel %vm1271, %v1259, 0.0
    %v1515 = vadd.f32 %v1513, %v1514
    %v1516 = vsel %vm1271, %v1260, 0.0
    %v1517 = vadd.f32 %v1515, %v1516
    %v1518 = vsel %vm1271, %v1261, 0.0
    %v1519 = vadd.f32 %v1517, %v1518
    %v1520 = vsel %vm1271, %v1262, 0.0
    %v1521 = vadd.f32 %v1519, %v1520
    %v1522 = vsel %vm1271, %v1263, 0.0
    %v1523 = vadd.f32 %v1521, %v1522
    %v1524 = vsel %vm1271, %v1264, 0.0
    %v1525 = vadd.f32 %v1523, %v1524
    %v1526 = vsel %vm1271, %v1265, 0.0
    %v1527 = vadd.f32 %v1525, %v1526
    %v1528 = vsel %vm1271, %v1266, 0.0
    %v1529 = vadd.f32 %v1527, %v1528
    %v1530 = vsel %vm1271, %v1267, 0.0
    %v1531 = vadd.f32 %v1529, %v1530
    %v1532 = vsel %vm1271, %v1268, 0.0
    %v1533 = vadd.f32 %v1531, %v1532
    %v1534 = vsel %vm1271, %v1269, 0.0
    %v1535 = vadd.f32 %v1533, %v1534
    %v1536 = vrot.slane %v1535, 4
    %v1537 = vadd.f32 %v1535, %v1536
    %v1538 = vrot.slane %v1537, 2
    %v1539 = vadd.f32 %v1537, %v1538
    %v1540 = vrot.slane %v1539, 1
    %v1541 = vadd.f32 %v1539, %v1540
    %v1542 = vadd.f32 %v1408, %v1541
    %1543 = vst.msk [vmem:[#allocation2 + $0x1] sm:$0x1] %vm1406, %v1542
    // Predicated region
    $region10: #{tpu_custom_call.1} parent=1 // pred_check
      _
    $region11: #{tpu_custom_call.1} parent=1 // pred_check_branch
      %1545 = sbr.rel (0) target = $region13
    $region12: #{tpu_custom_call.1} parent=1 // pred_region
      %s1547 = ssub.s32 128, 128
      %1548 = vsyncadd [#allocation3], %s1547
      %s1550 = sshll.u32 [#allocation2], 4
      %s1551 = int_to_ptr.vmem [resolvable:$true] %s1550
      %1553 = dma.vmem_to_hbm [thread:$0]  %s1551, 128, %s1, [#allocation3]
    $region13: #{tpu_custom_call.1} parent=1 // pred_fallthru
      _
    // Predicated region
    $region14: #{tpu_custom_call.1} parent=1 // pred_check
      _
    $region15: #{tpu_custom_call.1} parent=1 // pred_check_branch
      %1555 = sbr.rel (0) target = $region17
    $region16: #{tpu_custom_call.1} parent=1 // pred_region
      %1556 = dma.done [#allocation3], 128
    $region17: #{tpu_custom_call.1} parent=1 // pred_fallthru
      _
    %1557 = vsyncpa [#allocation3], 1

</llo_original>
